<compile_context>
chip_gen: v7x
topology: tpu7x:2x2x1
jax: 0.10.0
libtpu: 0.0.40
codegen_flags: <defaults>
</compile_context>

<pallas_src>
import jax
import jax.numpy as jnp
from jax.experimental import pallas as pl
from jax.experimental.pallas import tpu as pltpu


def _round_up(x, m):
    return (x + m - 1) // m * m


def gcn_layer_kernel(adj_ref, x_ref, wt_ref, b_ref, out_ref, acc_ref):
    """out[r] = ReLU((sum_k adj[r,k] @ x[k]) @ W^T + b), accumulated over the k grid axis.

    adj_ref: (TR, TK)  compute dtype (f32 or bf16)
    x_ref:   (TK, Hp)  compute dtype
    wt_ref:  (Hp, Hp)  compute dtype (pre-transposed Linear weight)
    b_ref:   (1, Hp)   f32
    out_ref: (TR, Hp)  out dtype
    acc_ref: (TR, Hp)  f32 VMEM accumulator (persists across the k axis)
    """
    k = pl.program_id(2)

    @pl.when(k == 0)
    def _init():
        acc_ref[...] = jnp.zeros_like(acc_ref)

    # Aggregation matmul on the MXU, f32 accumulation across K tiles.
    acc_ref[...] += jnp.dot(adj_ref[...], x_ref[...],
                            preferred_element_type=jnp.float32)

    @pl.when(k == pl.num_programs(2) - 1)
    def _finalize():
        # Dense-layer matmul (operands in compute dtype, f32 accumulate) + bias + ReLU.
        h = jnp.dot(acc_ref[...].astype(wt_ref.dtype), wt_ref[...],
                    preferred_element_type=jnp.float32)
        h = jnp.maximum(h + b_ref[...], 0.0)
        out_ref[...] = h.astype(out_ref.dtype)


def _vmem_budget_bytes():
    """(scoped vmem limit, tile-selection budget) sized per TPU generation."""
    phys = 128 * 1024 * 1024
    try:
        cap = getattr(pltpu.get_tpu_info(), "vmem_capacity_bytes", None)
        if cap:
            phys = int(cap)
    except Exception:
        pass
    # ~48 MiB scoped limit on v7x (64 MiB physical), ~96 MiB on v5e/v6e (128 MiB),
    # leaving headroom for Mosaic internal scratch.
    limit = min(phys * 3 // 4, 96 * 1024 * 1024)
    limit = max(limit, 16 * 1024 * 1024)
    return limit, int(limit * 0.85)


def _select_tiles(n, h_pad, cdt_bytes, out_bytes, budget, max_tr=None, max_tk=None):
    """Largest (row_tile, k_tile) whose per-step VMEM footprint fits `budget`."""
    sub = 8 if cdt_bytes >= 4 else 16           # sublane granularity (f32: 8, bf16: 16)
    n_min = _round_up(n, sub)                   # minimal (sublane-only) node padding

    def footprint(tr, tk):
        return (2 * tr * tk * cdt_bytes         # adj tile (double-buffered)
                + 2 * tk * h_pad * cdt_bytes    # feature block (double-buffered)
                + 2 * tr * h_pad * out_bytes    # output tile
                + h_pad * h_pad * cdt_bytes     # shared weight (single-buffered)
                + h_pad * 4                     # shared bias
                + tr * h_pad * 4)               # f32 accumulator scratch

    # Row tiles: full rows for small graphs (one step), else <=1024 so the row axis
    # still yields >=2 parallel tiles per batch for v7x's two TensorCores.
    tr_cands = ([n_min] if n_min <= 1024 else []) + [
        t for t in (1024, 512, 256, 128, 64, 32, 16, 8) if t < n_min and t % sub == 0]
    # K tiles: prefer the whole (sublane-padded) node dim -> minimal column padding and
    # a resident feature slab; otherwise a 128-multiple so lane tiling stays legal.
    tk_cands = [n_min] + [t for t in (2048, 1024, 512, 256, 128) if t < n_min]
    if max_tr is not None:
        tr_cands = [t for t in tr_cands if t <= max_tr] or [min(tr_cands)]
    if max_tk is not None:
        tk_cands = [t for t in tk_cands if t <= max_tk] or [min(tk_cands)]

    for tr in tr_cands:                # bigger row tiles first: fewer feature re-reads
        for tk in tk_cands:            # then the biggest K block that still fits
            if footprint(tr, tk) <= budget:
                return tr, tk
    return tr_cands[-1], tk_cands[-1]  # last resort; vmem_limit still protects us


_SINGLE_BUFFER_WEIGHTS = True  # flipped off if this Pallas build rejects pl.Buffered(1)


def _gcn_layer(adj_p, x_p, wt_p, b_p, *, out_dtype, tr, tk, vmem_limit):
    global _SINGLE_BUFFER_WEIGHTS
    B, m_pad, k_pad = adj_p.shape
    h_pad = x_p.shape[-1]
    n_row = m_pad // tr
    n_k = k_pad // tk

    in_bytes = sum(int(a.size) * a.dtype.itemsize for a in (adj_p, wt_p, b_p))
    in_bytes += int(x_p.size) * x_p.dtype.itemsize * n_row     # x re-read per row tile
    out_nbytes = B * m_pad * h_pad * jnp.dtype(out_dtype).itemsize
    cost = pl.CostEstimate(
        flops=int(2 * B * (m_pad * k_pad * h_pad + m_pad * h_pad * h_pad)),
        transcendentals=0,
        bytes_accessed=int(in_bytes + out_nbytes),
    )

    def build(single_buffer_weights):
        shared = dict(pipeline_mode=pl.Buffered(1)) if single_buffer_weights else {}
        return pl.pallas_call(
            gcn_layer_kernel,
            out_shape=jax.ShapeDtypeStruct((B, m_pad, h_pad), out_dtype),
            grid_spec=pltpu.PrefetchScalarGridSpec(
                num_scalar_prefetch=0,
                grid=(B, n_row, n_k),
                in_specs=[
                    # adjacency tile; leading batch dim squeezed out of the kernel view.
                    pl.BlockSpec((None, tr, tk), lambda b, r, k: (b, r, k)),
                    # feature K-block for this graph.
                    pl.BlockSpec((None, tk, h_pad), lambda b, r, k: (b, k, 0)),
                    # shared weight / bias: constant index_map -> fetched once, reused.
                    pl.BlockSpec((h_pad, h_pad), lambda b, r, k: (0, 0), **shared),
                    pl.BlockSpec((1, h_pad), lambda b, r, k: (0, 0), **shared),
                ],
                out_specs=pl.BlockSpec((None, tr, h_pad), lambda b, r, k: (b, r, 0)),
                scratch_shapes=[pltpu.VMEM((tr, h_pad), jnp.float32)],
            ),
            compiler_params=pltpu.CompilerParams(
                dimension_semantics=("parallel", "parallel", "arbitrary"),
                vmem_limit_bytes=int(vmem_limit),
            ),
            cost_estimate=cost,
        )

    if _SINGLE_BUFFER_WEIGHTS:
        try:
            return build(True)(adj_p, x_p, wt_p, b_p)
        except Exception:
            # This Pallas build rejects single-buffered shared operands; fall back to
            # default double-buffering (slightly more VMEM, identical math).
            _SINGLE_BUFFER_WEIGHTS = False
    return build(False)(adj_p, x_p, wt_p, b_p)


def graph_emb(adj, feats, w1, b1, w2, b2, *, compute_dtype=jnp.float32,
              _max_tr=None, _max_tk=None):
    """2-layer GCN forward: feats = ReLU(Linear(bmm(adj, feats))) applied twice.

    adj: (B, N, N), feats: (B, N, H), w*: (H, H) PyTorch Linear weights (out x in),
    b*: (H,).  Returns (B, N, H) in feats.dtype.  With compute_dtype=bf16 the MXU
    operands are bf16 (f32 accumulate / bias / ReLU), halving adjacency HBM traffic.
    """
    B, N, _ = adj.shape
    H = feats.shape[-1]
    out_dtype = feats.dtype
    cdt = jnp.dtype(compute_dtype)
    cdt_bytes = cdt.itemsize

    # Lane-dense feature dim: pad H up to a multiple of 128.
    h_pad = _round_up(max(H, 1), 128)

    vmem_limit, budget = _vmem_budget_bytes()
    tr, tk = _select_tiles(N, h_pad, cdt_bytes,
                           max(cdt_bytes, jnp.dtype(out_dtype).itemsize),
                           budget, max_tr=_max_tr, max_tk=_max_tk)

    # Asymmetric padding: adj/out ROWS (M dim) -> row-tile multiple; node/contraction
    # dim (adj cols, feature rows) -> K-tile multiple only (== sublane multiple when the
    # whole node dim is a single K block).
    m_pad = _round_up(N, tr)
    k_pad = _round_up(N, tk)

    # Zero padding is exact for the real (N, H) block: padded adj columns / feature rows
    # and padded feature/weight columns contribute exact zeros; junk in padded output
    # rows is killed by the zero adj columns in the next layer and sliced off at the end.
    adj_p = jnp.pad(adj.astype(cdt), ((0, 0), (0, m_pad - N), (0, k_pad - N)))
    x_p = jnp.pad(feats.astype(cdt), ((0, 0), (0, k_pad - N), (0, h_pad - H)))
    w1t_p = jnp.pad(w1.T.astype(cdt), ((0, h_pad - H), (0, h_pad - H)))
    w2t_p = jnp.pad(w2.T.astype(cdt), ((0, h_pad - H), (0, h_pad - H)))
    b1_p = jnp.pad(b1.astype(jnp.float32), (0, h_pad - H)).reshape(1, h_pad)
    b2_p = jnp.pad(b2.astype(jnp.float32), (0, h_pad - H)).reshape(1, h_pad)

    # Layer 1: intermediate kept in compute dtype (halves HBM traffic when bf16).
    h1 = _gcn_layer(adj_p, x_p, w1t_p, b1_p, out_dtype=cdt, tr=tr, tk=tk,
                    vmem_limit=vmem_limit)

    # Layer 2's feature input needs k_pad rows: slice (or zero-extend) layer-1's output.
    if k_pad <= m_pad:
        x2 = h1[:, :k_pad, :]
    else:
        x2 = jnp.pad(h1, ((0, 0), (0, k_pad - m_pad), (0, 0)))

    # Layer 2: final output in the caller's dtype.
    h2 = _gcn_layer(adj_p, x2, w2t_p, b2_p, out_dtype=out_dtype, tr=tr, tk=tk,
                    vmem_limit=vmem_limit)

    return h2[:, :N, :H]


def graph_emb_ref(adj, feats, w1, b1, w2, b2):
    # Pure-JAX reference matching the PyTorch semantics.
    h = jnp.einsum("bnm,bmh->bnh", adj, feats)
    h = jnp.maximum(h @ w1.T + b1, 0.0)
    h = jnp.einsum("bnm,bmh->bnh", adj, h)
    h = jnp.maximum(h @ w2.T + b2, 0.0)
    return h


if __name__ == "__main__":
    B, N, H = 2, 16, 32  # batch, num graph nodes, hidden_dim

    key = jax.random.PRNGKey(0)
    k_adj, k_feat, k_w1, k_b1, k_w2, k_b2 = jax.random.split(key, 6)

    adj = jax.random.uniform(k_adj, (B, N, N), dtype=jnp.float32)
    feats = jax.random.normal(k_feat, (B, N, H), dtype=jnp.float32)

    # Deterministic parameter init mirroring nn.Linear's uniform(-1/sqrt(H), 1/sqrt(H)).
    bound = 1.0 / jnp.sqrt(jnp.float32(H))
    w1 = jax.random.uniform(k_w1, (H, H), minval=-bound, maxval=bound, dtype=jnp.float32)
    b1 = jax.random.uniform(k_b1, (H,), minval=-bound, maxval=bound, dtype=jnp.float32)
    w2 = jax.random.uniform(k_w2, (H, H), minval=-bound, maxval=bound, dtype=jnp.float32)
    b2 = jax.random.uniform(k_b2, (H,), minval=-bound, maxval=bound, dtype=jnp.float32)

    ref = graph_emb_ref(adj, feats, w1, b1, w2, b2)

    # f32 path (matches the reference under JAX's default TPU matmul precision).
    out_f32 = jax.block_until_ready(graph_emb(adj, feats, w1, b1, w2, b2))
    assert out_f32.shape == (B, N, H)
    assert jnp.allclose(out_f32, ref, atol=1e-4, rtol=1e-4)

    # bf16-MXU path: bf16 operands, f32 accumulation/bias/ReLU -> looser tolerance.
    out_bf16 = jax.block_until_ready(
        graph_emb(adj, feats, w1, b1, w2, b2, compute_dtype=jnp.bfloat16))
    assert out_bf16.shape == (B, N, H)
    assert jnp.allclose(out_bf16.astype(jnp.float32), ref, atol=5e-2, rtol=5e-2)

    # Larger, non-aligned N with forced small tiles: exercises the multi-row-tile grid,
    # the K-reduction accumulator, asymmetric padding, and the padded-row handling
    # between the two layers.
    N2 = 300
    k_adj2, k_feat2 = jax.random.split(jax.random.PRNGKey(1), 2)
    adj2 = jax.random.uniform(k_adj2, (B, N2, N2), dtype=jnp.float32) / N2
    feats2 = jax.random.normal(k_feat2, (B, N2, H), dtype=jnp.float32)
    ref2 = graph_emb_ref(adj2, feats2, w1, b1, w2, b2)
    out2 = jax.block_until_ready(
        graph_emb(adj2, feats2, w1, b1, w2, b2, _max_tr=128, _max_tk=256))
    assert out2.shape == (B, N2, H)
    assert jnp.allclose(out2, ref2, atol=5e-3, rtol=5e-3)

    print("KERNEL_OK")
</pallas_src>

<mosaic_0001>
module attributes {stable_mosaic.version = 11 : i64} {
  func.func @gcn_layer_kernel(%arg0: i32, %arg1: i32, %arg2: i32, %arg3: memref<1x16x16xf32, #tpu.memory_space<vmem>>, %arg4: memref<1x16x128xf32, #tpu.memory_space<vmem>>, %arg5: memref<128x128xf32, #tpu.memory_space<vmem>>, %arg6: memref<1x128xf32, #tpu.memory_space<vmem>>, %arg7: memref<1x16x128xf32, #tpu.memory_space<vmem>>, %arg8: memref<16x128xf32, #tpu.memory_space<vmem>>) attributes {dimension_semantics = [#tpu.dimension_semantics<parallel>, #tpu.dimension_semantics<parallel>, #tpu.dimension_semantics<arbitrary>], iteration_bounds = array<i64: 2, 1, 1>, scalar_prefetch = 0 : i64, scratch_operands = 1 : i64, tpu.core_type = #tpu.core_type<tc>, window_params = [{transform_indices = @transform_0, window_bounds = array<i64: 1, 16, 16>}, {transform_indices = @transform_1, window_bounds = array<i64: 1, 16, 128>}, {pipeline_mode = #tpu.pipeline_mode<synchronous>, transform_indices = @transform_2, window_bounds = array<i64: 128, 128>}, {pipeline_mode = #tpu.pipeline_mode<synchronous>, transform_indices = @transform_3, window_bounds = array<i64: 1, 128>}, {transform_indices = @transform_4, window_bounds = array<i64: 1, 16, 128>}]} {
    %c0_i32 = arith.constant 0 : i32
    %0 = arith.cmpi eq, %arg2, %c0_i32 : i32
    %1 = arith.extui %0 : i1 to i32
    %c0_i32_0 = arith.constant 0 : i32
    %2 = arith.cmpi ne, %1, %c0_i32_0 : i32
    scf.if %2 {
      %cst_12 = arith.constant 0.000000e+00 : f32
      %14 = vector.broadcast %cst_12 : f32 to vector<16x128xf32>
      %c0_13 = arith.constant 0 : index
      %c0_14 = arith.constant 0 : index
      %15 = vector.load %arg8[%c0_13, %c0_14] : memref<16x128xf32, #tpu.memory_space<vmem>>, vector<16x128xf32>
      tpu.vector_store %arg8[%c0_13, %c0_14], %14 {strides = array<i32>} : memref<16x128xf32, #tpu.memory_space<vmem>>, vector<16x128xf32>,
    } else {
    }
    %c0 = arith.constant 0 : index
    %c0_1 = arith.constant 0 : index
    %3 = vector.load %arg8[%c0, %c0_1] : memref<16x128xf32, #tpu.memory_space<vmem>>, vector<16x128xf32>
    %c0_2 = arith.constant 0 : index
    %c0_3 = arith.constant 0 : index
    %c0_4 = arith.constant 0 : index
    %4 = vector.load %arg3[%c0_2, %c0_3, %c0_4] : memref<1x16x16xf32, #tpu.memory_space<vmem>>, vector<1x16x16xf32>
    %5 = vector.shape_cast %4 : vector<1x16x16xf32> to vector<16x16xf32>
    %c0_5 = arith.constant 0 : index
    %c0_6 = arith.constant 0 : index
    %c0_7 = arith.constant 0 : index
    %6 = vector.load %arg4[%c0_5, %c0_6, %c0_7] : memref<1x16x128xf32, #tpu.memory_space<vmem>>, vector<1x16x128xf32>
    %7 = vector.shape_cast %6 : vector<1x16x128xf32> to vector<16x128xf32>
    %cst = arith.constant dense<0.000000e+00> : vector<16x128xf32>
    %8 = tpu.matmul %5, %7, %cst {dimension_numbers = #tpu.dot_dimension_numbers<[1], [0], [0], [1], [0, 0, 1, 1], [], []>} : vector<16x16xf32>, vector<16x128xf32>, vector<16x128xf32> -> vector<16x128xf32>
    %9 = arith.addf %3, %8 : vector<16x128xf32>
    %c0_8 = arith.constant 0 : index
    %c0_9 = arith.constant 0 : index
    %10 = vector.load %arg8[%c0_8, %c0_9] : memref<16x128xf32, #tpu.memory_space<vmem>>, vector<16x128xf32>
    tpu.vector_store %arg8[%c0_8, %c0_9], %9 {strides = array<i32>} : memref<16x128xf32, #tpu.memory_space<vmem>>, vector<16x128xf32>,
    %c0_i32_10 = arith.constant 0 : i32
    %11 = arith.cmpi eq, %arg2, %c0_i32_10 : i32
    %12 = arith.extui %11 : i1 to i32
    %c0_i32_11 = arith.constant 0 : i32
    %13 = arith.cmpi ne, %12, %c0_i32_11 : i32
    scf.if %13 {
      %c0_12 = arith.constant 0 : index
      %c0_13 = arith.constant 0 : index
      %14 = vector.load %arg8[%c0_12, %c0_13] : memref<16x128xf32, #tpu.memory_space<vmem>>, vector<16x128xf32>
      %c0_14 = arith.constant 0 : index
      %c0_15 = arith.constant 0 : index
      %15 = vector.load %arg5[%c0_14, %c0_15] : memref<128x128xf32, #tpu.memory_space<vmem>>, vector<128x128xf32>
      %cst_16 = arith.constant dense<0.000000e+00> : vector<16x128xf32>
      %16 = tpu.matmul %14, %15, %cst_16 {dimension_numbers = #tpu.dot_dimension_numbers<[1], [0], [0], [1], [0, 0, 1, 1], [], []>} : vector<16x128xf32>, vector<128x128xf32>, vector<16x128xf32> -> vector<16x128xf32>
      %c0_17 = arith.constant 0 : index
      %c0_18 = arith.constant 0 : index
      %17 = vector.load %arg6[%c0_17, %c0_18] : memref<1x128xf32, #tpu.memory_space<vmem>>, vector<1x128xf32>
      %18 = vector.broadcast %17 : vector<1x128xf32> to vector<16x128xf32>
      %19 = arith.addf %16, %18 : vector<16x128xf32>
      %cst_19 = arith.constant 0.000000e+00 : f32
      %20 = vector.broadcast %cst_19 : f32 to vector<16x128xf32>
      %21 = arith.maximumf %19, %20 : vector<16x128xf32>
      %c0_20 = arith.constant 0 : index
      %c0_21 = arith.constant 0 : index
      %c0_22 = arith.constant 0 : index
      %22 = vector.load %arg7[%c0_20, %c0_21, %c0_22] : memref<1x16x128xf32, #tpu.memory_space<vmem>>, vector<1x16x128xf32>
      %23 = vector.shape_cast %22 : vector<1x16x128xf32> to vector<16x128xf32>
      %24 = vector.shape_cast %21 : vector<16x128xf32> to vector<1x16x128xf32>
      tpu.vector_store %arg7[%c0_20, %c0_21, %c0_22], %24 {strides = array<i32>} : memref<1x16x128xf32, #tpu.memory_space<vmem>>, vector<1x16x128xf32>,
    } else {
    }
    return
  }
  func.func @transform_0(%arg0: i32, %arg1: i32, %arg2: i32) -> (i32, i32, i32) {
    %c0_i32 = arith.constant 0 : i32
    return %arg0, %arg1, %arg2 : i32, i32, i32
  }
  func.func @transform_1(%arg0: i32, %arg1: i32, %arg2: i32) -> (i32, i32, i32) {
    %c0_i32 = arith.constant 0 : i32
    %c0_i32_0 = arith.constant 0 : i32
    return %arg0, %arg2, %c0_i32 : i32, i32, i32
  }
  func.func @transform_2(%arg0: i32, %arg1: i32, %arg2: i32) -> (i32, i32) {
    %c0_i32 = arith.constant 0 : i32
    %c0_i32_0 = arith.constant 0 : i32
    %c0_i32_1 = arith.constant 0 : i32
    return %c0_i32, %c0_i32_0 : i32, i32
  }
  func.func @transform_3(%arg0: i32, %arg1: i32, %arg2: i32) -> (i32, i32) {
    %c0_i32 = arith.constant 0 : i32
    %c0_i32_0 = arith.constant 0 : i32
    %c0_i32_1 = arith.constant 0 : i32
    return %c0_i32, %c0_i32_0 : i32, i32
  }
  func.func @transform_4(%arg0: i32, %arg1: i32, %arg2: i32) -> (i32, i32, i32) {
    %c0_i32 = arith.constant 0 : i32
    %c0_i32_0 = arith.constant 0 : i32
    return %arg0, %arg1, %c0_i32 : i32, i32, i32
  }
}

module attributes {stable_mosaic.version = 11 : i64} {
  func.func @gcn_layer_kernel(%arg0: i32, %arg1: i32, %arg2: i32, %arg3: memref<1x16x16xf32, #tpu.memory_space<vmem>>, %arg4: memref<1x16x128xf32, #tpu.memory_space<vmem>>, %arg5: memref<128x128xf32, #tpu.memory_space<vmem>>, %arg6: memref<1x128xf32, #tpu.memory_space<vmem>>, %arg7: memref<1x16x128xf32, #tpu.memory_space<vmem>>, %arg8: memref<16x128xf32, #tpu.memory_space<vmem>>) attributes {dimension_semantics = [#tpu.dimension_semantics<parallel>, #tpu.dimension_semantics<parallel>, #tpu.dimension_semantics<arbitrary>], iteration_bounds = array<i64: 2, 1, 1>, scalar_prefetch = 0 : i64, scratch_operands = 1 : i64, tpu.core_type = #tpu.core_type<tc>, window_params = [{transform_indices = @transform_0, window_bounds = array<i64: 1, 16, 16>}, {transform_indices = @transform_1, window_bounds = array<i64: 1, 16, 128>}, {pipeline_mode = #tpu.pipeline_mode<synchronous>, transform_indices = @transform_2, window_bounds = array<i64: 128, 128>}, {pipeline_mode = #tpu.pipeline_mode<synchronous>, transform_indices = @transform_3, window_bounds = array<i64: 1, 128>}, {transform_indices = @transform_4, window_bounds = array<i64: 1, 16, 128>}]} {
    %c0_i32 = arith.constant 0 : i32
    %0 = arith.cmpi eq, %arg2, %c0_i32 : i32
    %1 = arith.extui %0 : i1 to i32
    %c0_i32_0 = arith.constant 0 : i32
    %2 = arith.cmpi ne, %1, %c0_i32_0 : i32
    scf.if %2 {
      %cst_12 = arith.constant 0.000000e+00 : f32
      %14 = vector.broadcast %cst_12 : f32 to vector<16x128xf32>
      %c0_13 = arith.constant 0 : index
      %c0_14 = arith.constant 0 : index
      %15 = vector.load %arg8[%c0_13, %c0_14] : memref<16x128xf32, #tpu.memory_space<vmem>>, vector<16x128xf32>
      tpu.vector_store %arg8[%c0_13, %c0_14], %14 {strides = array<i32>} : memref<16x128xf32, #tpu.memory_space<vmem>>, vector<16x128xf32>,
    } else {
    }
    %c0 = arith.constant 0 : index
    %c0_1 = arith.constant 0 : index
    %3 = vector.load %arg8[%c0, %c0_1] : memref<16x128xf32, #tpu.memory_space<vmem>>, vector<16x128xf32>
    %c0_2 = arith.constant 0 : index
    %c0_3 = arith.constant 0 : index
    %c0_4 = arith.constant 0 : index
    %4 = vector.load %arg3[%c0_2, %c0_3, %c0_4] : memref<1x16x16xf32, #tpu.memory_space<vmem>>, vector<1x16x16xf32>
    %5 = vector.shape_cast %4 : vector<1x16x16xf32> to vector<16x16xf32>
    %c0_5 = arith.constant 0 : index
    %c0_6 = arith.constant 0 : index
    %c0_7 = arith.constant 0 : index
    %6 = vector.load %arg4[%c0_5, %c0_6, %c0_7] : memref<1x16x128xf32, #tpu.memory_space<vmem>>, vector<1x16x128xf32>
    %7 = vector.shape_cast %6 : vector<1x16x128xf32> to vector<16x128xf32>
    %cst = arith.constant dense<0.000000e+00> : vector<16x128xf32>
    %8 = tpu.matmul %5, %7, %cst {dimension_numbers = #tpu.dot_dimension_numbers<[1], [0], [0], [1], [0, 0, 1, 1], [], []>} : vector<16x16xf32>, vector<16x128xf32>, vector<16x128xf32> -> vector<16x128xf32>
    %9 = arith.addf %3, %8 : vector<16x128xf32>
    %c0_8 = arith.constant 0 : index
    %c0_9 = arith.constant 0 : index
    %10 = vector.load %arg8[%c0_8, %c0_9] : memref<16x128xf32, #tpu.memory_space<vmem>>, vector<16x128xf32>
    tpu.vector_store %arg8[%c0_8, %c0_9], %9 {strides = array<i32>} : memref<16x128xf32, #tpu.memory_space<vmem>>, vector<16x128xf32>,
    %c0_i32_10 = arith.constant 0 : i32
    %11 = arith.cmpi eq, %arg2, %c0_i32_10 : i32
    %12 = arith.extui %11 : i1 to i32
    %c0_i32_11 = arith.constant 0 : i32
    %13 = arith.cmpi ne, %12, %c0_i32_11 : i32
    scf.if %13 {
      %c0_12 = arith.constant 0 : index
      %c0_13 = arith.constant 0 : index
      %14 = vector.load %arg8[%c0_12, %c0_13] : memref<16x128xf32, #tpu.memory_space<vmem>>, vector<16x128xf32>
      %c0_14 = arith.constant 0 : index
      %c0_15 = arith.constant 0 : index
      %15 = vector.load %arg5[%c0_14, %c0_15] : memref<128x128xf32, #tpu.memory_space<vmem>>, vector<128x128xf32>
      %cst_16 = arith.constant dense<0.000000e+00> : vector<16x128xf32>
      %16 = tpu.matmul %14, %15, %cst_16 {dimension_numbers = #tpu.dot_dimension_numbers<[1], [0], [0], [1], [0, 0, 1, 1], [], []>} : vector<16x128xf32>, vector<128x128xf32>, vector<16x128xf32> -> vector<16x128xf32>
      %c0_17 = arith.constant 0 : index
      %c0_18 = arith.constant 0 : index
      %17 = vector.load %arg6[%c0_17, %c0_18] : memref<1x128xf32, #tpu.memory_space<vmem>>, vector<1x128xf32>
      %18 = vector.broadcast %17 : vector<1x128xf32> to vector<16x128xf32>
      %19 = arith.addf %16, %18 : vector<16x128xf32>
      %cst_19 = arith.constant 0.000000e+00 : f32
      %20 = vector.broadcast %cst_19 : f32 to vector<16x128xf32>
      %21 = arith.maximumf %19, %20 : vector<16x128xf32>
      %c0_20 = arith.constant 0 : index
      %c0_21 = arith.constant 0 : index
      %c0_22 = arith.constant 0 : index
      %22 = vector.load %arg7[%c0_20, %c0_21, %c0_22] : memref<1x16x128xf32, #tpu.memory_space<vmem>>, vector<1x16x128xf32>
      %23 = vector.shape_cast %22 : vector<1x16x128xf32> to vector<16x128xf32>
      %24 = vector.shape_cast %21 : vector<16x128xf32> to vector<1x16x128xf32>
      tpu.vector_store %arg7[%c0_20, %c0_21, %c0_22], %24 {strides = array<i32>} : memref<1x16x128xf32, #tpu.memory_space<vmem>>, vector<1x16x128xf32>,
    } else {
    }
    return
  }
  func.func @transform_0(%arg0: i32, %arg1: i32, %arg2: i32) -> (i32, i32, i32) {
    %c0_i32 = arith.constant 0 : i32
    return %arg0, %arg1, %arg2 : i32, i32, i32
  }
  func.func @transform_1(%arg0: i32, %arg1: i32, %arg2: i32) -> (i32, i32, i32) {
    %c0_i32 = arith.constant 0 : i32
    %c0_i32_0 = arith.constant 0 : i32
    return %arg0, %arg2, %c0_i32 : i32, i32, i32
  }
  func.func @transform_2(%arg0: i32, %arg1: i32, %arg2: i32) -> (i32, i32) {
    %c0_i32 = arith.constant 0 : i32
    %c0_i32_0 = arith.constant 0 : i32
    %c0_i32_1 = arith.constant 0 : i32
    return %c0_i32, %c0_i32_0 : i32, i32
  }
  func.func @transform_3(%arg0: i32, %arg1: i32, %arg2: i32) -> (i32, i32) {
    %c0_i32 = arith.constant 0 : i32
    %c0_i32_0 = arith.constant 0 : i32
    %c0_i32_1 = arith.constant 0 : i32
    return %c0_i32, %c0_i32_0 : i32, i32
  }
  func.func @transform_4(%arg0: i32, %arg1: i32, %arg2: i32) -> (i32, i32, i32) {
    %c0_i32 = arith.constant 0 : i32
    %c0_i32_0 = arith.constant 0 : i32
    return %arg0, %arg1, %c0_i32 : i32, i32, i32
  }
}

</mosaic_0001>

<llo_original>
// kernel: tpu_custom_call.1
$region0: #{tpu_custom_call.1}
  #allocation0 [shape = 'u32[]', space=smem, size = 0x4, offset = 0x4, fixed_abs, tag = 'smem constant byte address 0x4 - core index']
  #allocation1 [shape = 'u32[144,128]{1,0:T(1,128)}', space=vmem, size = 0x12000, scoped, tag = 'internal scratch']
  #allocation2 [shape = 'f32[16,128]{1,0:T(8,128)}', space=vmem, size = 0x2000, scoped, tag = 'scratch operand']
  %s0 = inlined_call_operand.hbm [shape: f32[2,16,16], index: 0, kind: input, shape index: {}]
  %s1 = inlined_call_operand.hbm [shape: f32[2,16,128], index: 1, kind: input, shape index: {}]
  %s2 = inlined_call_operand.hbm [shape: f32[128,128], index: 2, kind: input, shape index: {}]
  %s3 = inlined_call_operand.hbm [shape: f32[1,128], index: 3, kind: input, shape index: {}]
  %s4 = inlined_call_operand.hbm [shape: f32[2,16,128], index: 4, kind: output, shape index: {}]
  %s5 = sld [smem:[#allocation0]]
  $region73: #{tpu_custom_call.1} parent=0
    _
  %s7 = ssub.s32 1, %s5
  %s8 = scalar_select 0, %s7, %s5
  $region1: #{tpu_custom_call.1} parent=0
    #allocation3 [shape = 'u8[16384]{0}', space=vmem, size = 0x4000, scoped, tag = 'input window, operand 0']
    #allocation4 [shape = 's32[2]{0}', space=sflag, size = 0x8, scoped, tag = 'scoped memory for tpu_custom_call.1']
    #allocation5 [shape = 's32[2]{0}', space=sflag, size = 0x8, scoped, tag = 'scoped memory for tpu_custom_call.1']
    #allocation6 [shape = 'u8[16384]{0}', space=vmem, size = 0x4000, scoped, tag = 'input window, operand 1']
    #allocation7 [shape = 's32[2]{0}', space=sflag, size = 0x8, scoped, tag = 'scoped memory for tpu_custom_call.1']
    #allocation8 [shape = 'u8[65536]{0}', space=vmem, size = 0x10000, scoped, tag = 'input window, operand 2, single buffered']
    #allocation9 [shape = 'u8[512]{0}', space=vmem, size = 0x400, scoped, tag = 'input window, operand 3, single buffered']
    #allocation10 [shape = 's32[1]{0}', space=sflag, size = 0x4, scoped, tag = 'scoped memory for tpu_custom_call.1']
    #allocation11 [shape = 'u8[16384]{0}', space=vmem, size = 0x4000, scoped, tag = 'output window, operand 0']
    %9 = vsyncpa [#allocation4], 0
    %s10 = scalar_lea.sflag [#allocation4], 1
    %11 = vsyncpa %s10, 0
    %12 = vsyncpa [#allocation7], 0
    %s13 = scalar_lea.sflag [#allocation7], 1
    %14 = vsyncpa %s13, 0
    %15 = vsyncpa [#allocation10], 0
    %16 = vsyncpa [#allocation5], 0
    %s17 = scalar_lea.sflag [#allocation5], 1
    %18 = vsyncpa %s17, 0
    loop: start=0, step=1, limit=4
    $region2: #{tpu_custom_call.1} parent=1 // loop_pre_header
      _
    $region3: #{tpu_custom_call.1} parent=1 // loop_header
      %s20 = sphi 0, %s24
      %p21 = scmp.ge.s32.totalorder %s20, 4
      %s27 = sphi 0, %s46
      %s28 = sphi 0, %s42
      %s29 = sphi 0, %s38
      %s30 = sphi 0, %s27
      %s31 = sphi 0, %s28
      %s32 = sphi 0, %s29
      %s33 = sphi 0, %s30
      %s34 = sphi 0, %s31
      %s35 = sphi 0, %s32
      %s53 = sphi 0, %s55
      %s56 = sphi 0, %s53
      %s57 = sphi 0, %s56
      %s73 = sphi 0, %s57
      %s81 = sphi 0, %s83
      %s84 = sphi 0, %s81
      %s85 = sphi 0, %s84
      %s101 = sphi 0, %s85
      %s105 = sphi 0, %s105
      %s107 = sphi 0, %s105
      %s108 = sphi 0, %s107
      %s122 = sphi 0, %s108
      %s126 = sphi 0, %s126
      %s128 = sphi 0, %s126
      %s129 = sphi 0, %s128
      %s143 = sphi 0, %s129
      %s151 = sphi 0, %s153
      %s154 = sphi 0, %s151
      %s155 = sphi 0, %s154
      %s171 = sphi 0, %s155
    $region4: #{tpu_custom_call.1} parent=1 // loop_header_branch
      %23 = sbr.rel (%p21) target = $region8
    $region5: #{tpu_custom_call.1} parent=1 // loop_body
      %s25 = ssub.s32 %s20, 1
      %s26 = ssub.s32 %s20, 2
      %s36 = sadd.s32 1, %s29
      %p37 = scmp.ge.s32.totalorder %s36, 1
      %s38 = scalar_select %p37, 0, %s36
      %s39 = sadd.s32 1, %s28
      %s40 = scalar_select %p37, %s39, %s28
      %p41 = scmp.ge.s32.totalorder %s40, 1
      %s42 = scalar_select %p41, 0, %s40
      %s43 = sadd.s32 1, %s27
      %s44 = scalar_select %p41, %s43, %s27
      %p45 = scmp.ge.s32.totalorder %s44, 2
      %s46 = scalar_select %p45, 0, %s44
      %s47 = ssub.s32 %s27, %s46
      %s48 = ssub.s32 %s28, %s42
      %s49 = sor.u32 %s47, %s48
      %s50 = ssub.s32 %s29, %s38
      %s51 = sor.u32 %s49, %s50
      %p52 = scmp.eq.s32.totalorder %s51, 0
      %s54 = sadd.s32 %s53, 1
      %s55 = scalar_select %p52, %s53, %s54
      %p58 = pneg %p52
      %p59 = scmp.eq.s32.totalorder %s20, 1
      %p60 = por %p58, %p59
      %p61 = scmp.ne.s32.totalorder %s53, %s56
      %p62 = scmp.eq.s32.totalorder %s20, 0
      %p63 = por %p61, %p62
      %p64 = scmp.ne.s32.totalorder %s53, %s56
      %p65 = scmp.eq.s32.totalorder %s25, 1
      %p66 = por %p64, %p65
      %p67 = scmp.ne.s32.totalorder %s56, %s57
      %p68 = scmp.eq.s32.totalorder %s25, 0
      %p69 = por %p67, %p68
      %p70 = scmp.ne.s32.totalorder %s56, %s57
      %p71 = scmp.eq.s32.totalorder %s26, 1
      %p72 = por %p70, %p71
      %p74 = scmp.ne.s32.totalorder %s57, %s73
      %p75 = scmp.eq.s32.totalorder %s26, 0
      %p76 = por %p74, %p75
      %s77 = ssub.s32 %s27, %s46
      %s78 = ssub.s32 %s29, %s38
      %s79 = sor.u32 %s77, %s78
      %p80 = scmp.eq.s32.totalorder %s79, 0
      %s82 = sadd.s32 %s81, 1
      %s83 = scalar_select %p80, %s81, %s82
      %p86 = pneg %p80
      %p87 = scmp.eq.s32.totalorder %s20, 1
      %p88 = por %p86, %p87
      %p89 = scmp.ne.s32.totalorder %s81, %s84
      %p90 = scmp.eq.s32.totalorder %s20, 0
      %p91 = por %p89, %p90
      %p92 = scmp.ne.s32.totalorder %s81, %s84
      %p93 = scmp.eq.s32.totalorder %s25, 1
      %p94 = por %p92, %p93
      %p95 = scmp.ne.s32.totalorder %s84, %s85
      %p96 = scmp.eq.s32.totalorder %s25, 0
      %p97 = por %p95, %p96
      %p98 = scmp.ne.s32.totalorder %s84, %s85
      %p99 = scmp.eq.s32.totalorder %s26, 1
      %p100 = por %p98, %p99
      %p102 = scmp.ne.s32.totalorder %s85, %s101
      %p103 = scmp.eq.s32.totalorder %s26, 0
      %p104 = por %p102, %p103
      %s106 = sadd.s32 %s105, 1
      %p109 = scmp.eq.s32.totalorder %s20, 1
      %p110 = scmp.ne.s32.totalorder %s105, %s107
      %p111 = scmp.eq.s32.totalorder %s20, 0
      %p112 = por %p110, %p111
      %p113 = scmp.ne.s32.totalorder %s105, %s107
      %p114 = scmp.eq.s32.totalorder %s25, 1
      %p115 = por %p113, %p114
      %p116 = scmp.ne.s32.totalorder %s107, %s108
      %p117 = scmp.eq.s32.totalorder %s25, 0
      %p118 = por %p116, %p117
      %p119 = scmp.ne.s32.totalorder %s107, %s108
      %p120 = scmp.eq.s32.totalorder %s26, 1
      %p121 = por %p119, %p120
      %p123 = scmp.ne.s32.totalorder %s108, %s122
      %p124 = scmp.eq.s32.totalorder %s26, 0
      %p125 = por %p123, %p124
      %s127 = sadd.s32 %s126, 1
      %p130 = scmp.eq.s32.totalorder %s20, 1
      %p131 = scmp.ne.s32.totalorder %s126, %s128
      %p132 = scmp.eq.s32.totalorder %s20, 0
      %p133 = por %p131, %p132
      %p134 = scmp.ne.s32.totalorder %s126, %s128
      %p135 = scmp.eq.s32.totalorder %s25, 1
      %p136 = por %p134, %p135
      %p137 = scmp.ne.s32.totalorder %s128, %s129
      %p138 = scmp.eq.s32.totalorder %s25, 0
      %p139 = por %p137, %p138
      %p140 = scmp.ne.s32.totalorder %s128, %s129
      %p141 = scmp.eq.s32.totalorder %s26, 1
      %p142 = por %p140, %p141
      %p144 = scmp.ne.s32.totalorder %s129, %s143
      %p145 = scmp.eq.s32.totalorder %s26, 0
      %p146 = por %p144, %p145
      %s147 = ssub.s32 %s27, %s46
      %s148 = ssub.s32 %s28, %s42
      %s149 = sor.u32 %s147, %s148
      %p150 = scmp.eq.s32.totalorder %s149, 0
      %s152 = sadd.s32 %s151, 1
      %s153 = scalar_select %p150, %s151, %s152
      %p156 = pneg %p150
      %p157 = scmp.eq.s32.totalorder %s20, 1
      %p158 = por %p156, %p157
      %p159 = scmp.ne.s32.totalorder %s151, %s154
      %p160 = scmp.eq.s32.totalorder %s20, 0
      %p161 = por %p159, %p160
      %p162 = scmp.ne.s32.totalorder %s151, %s154
      %p163 = scmp.eq.s32.totalorder %s25, 1
      %p164 = por %p162, %p163
      %p165 = scmp.ne.s32.totalorder %s154, %s155
      %p166 = scmp.eq.s32.totalorder %s25, 0
      %p167 = por %p165, %p166
      %p168 = scmp.ne.s32.totalorder %s154, %s155
      %p169 = scmp.eq.s32.totalorder %s26, 1
      %p170 = por %p168, %p169
      %p172 = scmp.ne.s32.totalorder %s155, %s171
      %p173 = scmp.eq.s32.totalorder %s26, 0
      %p174 = por %p172, %p173
      %p175 = scmp.le.s32.totalorder 1, %s20
      %p176 = scmp.lt.s32.totalorder %s20, 3
      %p177 = pnand %p175, %p176
      %p178 = pneg %p177
      // Predicated region
      $region9: #{tpu_custom_call.1} parent=5 // pred_check
        _
      $region10: #{tpu_custom_call.1} parent=5 // pred_check_branch
        %180 = sbr.rel (%p177) target = $region12
      $region11: #{tpu_custom_call.1} parent=5 // pred_region
        %s181 = ssub.s32 %s20, 1
        // Predicated region
        $region13: #{tpu_custom_call.1} parent=11 // pred_check
          %p182 = pneg %p118
        $region14: #{tpu_custom_call.1} parent=11 // pred_check_branch
          %184 = sbr.rel (%p182) target = $region16
        $region15: #{tpu_custom_call.1} parent=11 // pred_region
          %s186 = ssub.s32 2048, 2048
          %187 = vsyncadd [#allocation7], %s186
          %s188 = sshll.u32 [#allocation8], 4
          %s189 = int_to_ptr.vmem [resolvable:$true] %s188
          %194 = dma.hbm_to_vmem [thread:$0]  %s2, 2048, %s189, [#allocation7], 128, 128, 8
        $region16: #{tpu_custom_call.1} parent=11 // pred_fallthru
          _
        // Predicated region
        $region17: #{tpu_custom_call.1} parent=11 // pred_check
          %p195 = pneg %p139
        $region18: #{tpu_custom_call.1} parent=11 // pred_check_branch
          %197 = sbr.rel (%p195) target = $region20
        $region19: #{tpu_custom_call.1} parent=11 // pred_region
          %s199 = ssub.s32 16, 16
          %200 = vsyncadd [#allocation10], %s199
          %s202 = sshll.u32 [#allocation9], 4
          %s203 = int_to_ptr.vmem [resolvable:$true] %s202
          %205 = dma.hbm_to_vmem [thread:$0]  %s3, 16, %s203, [#allocation10]
        $region20: #{tpu_custom_call.1} parent=11 // pred_fallthru
          _
      $region12: #{tpu_custom_call.1} parent=5 // pred_fallthru
        _
      %p206 = scmp.lt.s32.totalorder %s20, 2
      // Predicated region
      $region21: #{tpu_custom_call.1} parent=5 // pred_check
        %p207 = pneg %p206
      $region22: #{tpu_custom_call.1} parent=5 // pred_check_branch
        %209 = sbr.rel (%p207) target = $region24
      $region23: #{tpu_custom_call.1} parent=5 // pred_region
        // Predicated region
        $region25: #{tpu_custom_call.1} parent=23 // pred_check
          %p210 = pneg %p63
        $region26: #{tpu_custom_call.1} parent=23 // pred_check_branch
          %212 = sbr.rel (%p210) target = $region28
        $region27: #{tpu_custom_call.1} parent=23 // pred_region
          %s213 = sand.u32 %s53, 1
          %s214 = scalar_lea.sflag [#allocation4], %s213
          %s215 = sand.u32 %s53, 1
          %s216 = smul.addr %s215, 16
          %s217 = scalar_lea.vmem [#allocation3], %s216
          %s218 = smul.u32 2, %s28
          %s220 = ssub.s32 256, 256
          %221 = vsyncadd %s214, %s220
          %s222 = sadd.s32 %s29, %s218
          %s223 = smul.addr %s27, 2
          %s224 = sadd.s32 %s222, %s223
          %s225 = smul.addr %s224, 128
          %s226 = scalar_lea.hbm %s0, %s225
          %s227 = sshll.u32 %s217, 4
          %s228 = int_to_ptr.vmem [resolvable:$true] %s227
          %233 = dma.hbm_to_vmem [thread:$0]  %s226, 256, %s228, %s214, 128, 128, 8
        $region28: #{tpu_custom_call.1} parent=23 // pred_fallthru
          _
        // Predicated region
        $region29: #{tpu_custom_call.1} parent=23 // pred_check
          %p234 = pneg %p91
        $region30: #{tpu_custom_call.1} parent=23 // pred_check_branch
          %236 = sbr.rel (%p234) target = $region32
        $region31: #{tpu_custom_call.1} parent=23 // pred_region
          %s237 = sand.u32 %s20, 1
          %s238 = scalar_lea.sflag [#allocation7], %s237
          %s239 = sand.u32 %s81, 1
          %s240 = smul.addr %s239, 16
          %s241 = scalar_lea.vmem [#allocation6], %s240
          %s242 = smul.u32 2, %s29
          %s244 = ssub.s32 256, 256
          %245 = vsyncadd %s238, %s244
          %s246 = smul.addr %s27, 2
          %s247 = sadd.s32 %s242, %s246
          %s248 = smul.addr %s247, 128
          %s249 = scalar_lea.hbm %s1, %s248
          %s250 = sshll.u32 %s241, 4
          %s251 = int_to_ptr.vmem [resolvable:$true] %s250
          %256 = dma.hbm_to_vmem [thread:$0]  %s249, 256, %s251, %s238, 128, 128, 8
        $region32: #{tpu_custom_call.1} parent=23 // pred_fallthru
          _
      $region24: #{tpu_custom_call.1} parent=5 // pred_fallthru
        _
      %p257 = scmp.le.s32.totalorder 1, %s20
      %p258 = scmp.lt.s32.totalorder %s20, 3
      %p259 = pnand %p257, %p258
      %p260 = pneg %p259
      // Predicated region
      $region33: #{tpu_custom_call.1} parent=5 // pred_check
        _
      $region34: #{tpu_custom_call.1} parent=5 // pred_check_branch
        %262 = sbr.rel (%p259) target = $region36
      $region35: #{tpu_custom_call.1} parent=5 // pred_region
        %s263 = ssub.s32 %s20, 1
        %s264 = sand.u32 %s56, 1
        %s265 = scalar_lea.sflag [#allocation4], %s264
        %s266 = sand.u32 %s56, 1
        %s267 = smul.addr %s266, 16
        %s268 = scalar_lea.vmem [#allocation3], %s267
        // Predicated region
        $region37: #{tpu_custom_call.1} parent=35 // pred_check
          %p269 = pneg %p69
        $region38: #{tpu_custom_call.1} parent=35 // pred_check_branch
          %271 = sbr.rel (%p269) target = $region40
        $region39: #{tpu_custom_call.1} parent=35 // pred_region
          %272 = dma.done %s265, 256
        $region40: #{tpu_custom_call.1} parent=35 // pred_fallthru
          _
        %s273 = sand.u32 %s25, 1
        %s274 = scalar_lea.sflag [#allocation7], %s273
        %s275 = sand.u32 %s84, 1
        %s276 = smul.addr %s275, 16
        %s277 = scalar_lea.vmem [#allocation6], %s276
        // Predicated region
        $region41: #{tpu_custom_call.1} parent=35 // pred_check
          %p278 = pneg %p97
        $region42: #{tpu_custom_call.1} parent=35 // pred_check_branch
          %280 = sbr.rel (%p278) target = $region44
        $region43: #{tpu_custom_call.1} parent=35 // pred_region
          %281 = dma.done %s274, 256
        $region44: #{tpu_custom_call.1} parent=35 // pred_fallthru
          _
        // Predicated region
        $region45: #{tpu_custom_call.1} parent=35 // pred_check
          %p282 = pneg %p118
        $region46: #{tpu_custom_call.1} parent=35 // pred_check_branch
          %284 = sbr.rel (%p282) target = $region48
        $region47: #{tpu_custom_call.1} parent=35 // pred_region
          %285 = dma.done [#allocation7], 2048
        $region48: #{tpu_custom_call.1} parent=35 // pred_fallthru
          _
        // Predicated region
        $region49: #{tpu_custom_call.1} parent=35 // pred_check
          %p286 = pneg %p139
        $region50: #{tpu_custom_call.1} parent=35 // pred_check_branch
          %288 = sbr.rel (%p286) target = $region52
        $region51: #{tpu_custom_call.1} parent=35 // pred_region
          %289 = dma.done [#allocation10], 16
        $region52: #{tpu_custom_call.1} parent=35 // pred_fallthru
          _
        %s290 = sand.u32 %s56, 1
        %s291 = scalar_lea.sflag [#allocation4], %s290
        %s292 = sand.u32 %s56, 1
        %s293 = smul.addr %s292, 16
        %s294 = scalar_lea.vmem [#allocation3], %s293
        %p295 = pneg %p69
        %p296 = pneg %p66
        %s297 = sand.u32 %s25, 1
        %s298 = scalar_lea.sflag [#allocation7], %s297
        %s299 = sand.u32 %s84, 1
        %s300 = smul.addr %s299, 16
        %s301 = scalar_lea.vmem [#allocation6], %s300
        %p302 = pneg %p97
        %p303 = pneg %p94
        %p304 = pneg %p118
        %p305 = pneg %p115
        %p306 = pneg %p139
        %p307 = pneg %p136
        %p308 = pneg %p167
        %p309 = pneg %p164
        %s310 = sand.u32 %s154, 1
        %s311 = scalar_lea.sflag [#allocation5], %s310
        %s312 = sand.u32 %s154, 1
        %s313 = smul.addr %s312, 16
        %s314 = scalar_lea.vmem [#allocation11], %s313
        %s315 = smul.u32 2, %s31
        %s316 = smul.u32 2, %s32
        %s317 = smul.u32 2, %s31
        %p318 = scmp.eq.s32.totalorder %s32, 0
        // Predicated region
        $region53: #{tpu_custom_call.1} parent=35 // pred_check
          %p319 = pneg %p318
        $region54: #{tpu_custom_call.1} parent=35 // pred_check_branch
          %321 = sbr.rel (%p319) target = $region56
        $region55: #{tpu_custom_call.1} parent=35 // pred_region
          %322 = vst [vmem:[#allocation2] sm:$0xff] 0.0
          %323 = vst [vmem:[#allocation2 + $0x8] sm:$0xff] 0.0
        $region56: #{tpu_custom_call.1} parent=35 // pred_fallthru
          _
        %v324 = vld [vmem:[#allocation2] sm:$0xff]
        %v325 = vld [vmem:[#allocation2 + $0x8] sm:$0xff]
        %v326 = vld [vmem:[%s268] sm:$0xff]
        %v327 = vld [vmem:[%s268 + $0x8] sm:$0xff]
        %v328 = vld [vmem:[%s277] sm:$0xff]
        %v329 = vld [vmem:[%s277 + $0x8] sm:$0xff]
        %vm330 = vcmask 130048
        %v332 = vsel %vm330, %v326, 0
        %v335 = vsel %vm330, %v327, 0
        %337 = vmatprep.subr.mxu0 0.0
        %338 = vmatpush1.msra.mxu0 %v328
        %339 = vmatprep.subr.mxu0 0.0
        %340 = vmatpush1.msra.mxu0 %v329
        %341 = vmatprep.subr.mxu0 0.0
        %342 = vmatpush1.msra.mxu0 0.0
        %343 = vmatprep.subr.mxu0 0.0
        %344 = vmatpush1.msra.mxu0 0.0
        %345 = vmatprep.subr.mxu0 0.0
        %346 = vmatpush1.msra.mxu0 0.0
        %347 = vmatprep.subr.mxu0 0.0
        %348 = vmatpush1.msra.mxu0 0.0
        %349 = vmatprep.subr.mxu0 0.0
        %350 = vmatpush1.msra.mxu0 0.0
        %351 = vmatprep.subr.mxu0 0.0
        %352 = vmatpush1.msra.mxu0 0.0
        %353 = vmatprep.subr.mxu0 0.0
        %354 = vmatpush1.msra.mxu0 0.0
        %355 = vmatprep.subr.mxu0 0.0
        %356 = vmatpush1.msra.mxu0 0.0
        %357 = vmatprep.subr.mxu0 0.0
        %358 = vmatpush1.msra.mxu0 0.0
        %359 = vmatprep.subr.mxu0 0.0
        %360 = vmatpush1.msra.mxu0 0.0
        %361 = vmatprep.subr.mxu0 0.0
        %362 = vmatpush1.msra.mxu0 0.0
        %363 = vmatprep.subr.mxu0 0.0
        %364 = vmatpush1.msra.mxu0 0.0
        %365 = vmatprep.subr.mxu0 0.0
        %366 = vmatpush1.msra.mxu0 0.0
        %367 = vmatprep.subr.mxu0 0.0
        %368 = vmatpush1.msra.mxu0 0.0
        %369 = vmatprep.subr.mxu0 0.0
        %370 = vmatpush1.msra.mxu0 0.0
        %371 = vmatprep.subr.mxu0 0.0
        %372 = vmatpush1.msra.mxu0 0.0
        %373 = vmatprep.subr.mxu0 0.0
        %374 = vmatpush1.msra.mxu0 0.0
        %375 = vmatprep.subr.mxu0 0.0
        %376 = vmatpush1.msra.mxu0 0.0
        %377 = vmatprep.subr.mxu0 0.0
        %378 = vmatpush1.msra.mxu0 0.0
        %379 = vmatprep.subr.mxu0 0.0
        %380 = vmatpush1.msra.mxu0 0.0
        %381 = vmatprep.subr.mxu0 0.0
        %382 = vmatpush1.msra.mxu0 0.0
        %383 = vmatprep.subr.mxu0 0.0
        %384 = vmatpush1.msra.mxu0 0.0
        %385 = vmatprep.subr.mxu0 0.0
        %386 = vmatpush1.msra.mxu0 0.0
        %387 = vmatprep.subr.mxu0 0.0
        %388 = vmatpush1.msra.mxu0 0.0
        %389 = vmatprep.subr.mxu0 0.0
        %390 = vmatpush1.msra.mxu0 0.0
        %391 = vmatprep.subr.mxu0 0.0
        %392 = vmatpush1.msra.mxu0 0.0
        %393 = vmatprep.subr.mxu0 0.0
        %394 = vmatpush1.msra.mxu0 0.0
        %395 = vmatprep.subr.mxu0 0.0
        %396 = vmatpush1.msra.mxu0 0.0
        %397 = vmatprep.subr.mxu0 0.0
        %398 = vmatpush1.msra.mxu0 0.0
        %399 = vmatprep.subr.mxu0 0.0
        %400 = vmatpush1.msra.mxu0 0.0
        %401 = vmatprep.mubr.f32.mxu0 0.0
        %402 = vmatmul.mubr.f32.gmra.mrb[0].mxu0 %v332
        %v403 = vpop.f32.mrb[0].mxu0
        %v404 = vadd.f32 0.0, %v403
        %v405 = vpop.f32.mrb[0].mxu0
        %406 = vmatprep.mubr.f32.mxu0 0.0
        %407 = vmatmul.mubr.f32.gmra.mrb[0].mxu0 %v335
        %v408 = vpop.f32.mrb[0].mxu0
        %v409 = vadd.f32 0.0, %v408
        %v410 = vpop.f32.mrb[0].mxu0
        %411 = vdwg.mxu0
        %v412 = vadd.f32 %v324, %v404
        %v413 = vadd.f32 %v325, %v409
        %414 = vst [vmem:[#allocation2] sm:$0xff] %v412
        %415 = vst [vmem:[#allocation2 + $0x8] sm:$0xff] %v413
        // Predicated region
        $region57: #{tpu_custom_call.1} parent=35 // pred_check
          %p416 = pneg %p318
        $region58: #{tpu_custom_call.1} parent=35 // pred_check_branch
          %418 = sbr.rel (%p416) target = $region60
        $region59: #{tpu_custom_call.1} parent=35 // pred_region
          %v419 = vld [vmem:[#allocation2] sm:$0xff]
          %v420 = vld [vmem:[#allocation2 + $0x8] sm:$0xff]
          %v421 = vld [vmem:[#allocation8] sm:$0xff]
          %v422 = vld [vmem:[#allocation8 + $0x8] sm:$0xff]
          %v423 = vld [vmem:[#allocation8 + $0x10] sm:$0xff]
          %v424 = vld [vmem:[#allocation8 + $0x18] sm:$0xff]
          %v425 = vld [vmem:[#allocation8 + $0x20] sm:$0xff]
          %v426 = vld [vmem:[#allocation8 + $0x28] sm:$0xff]
          %v427 = vld [vmem:[#allocation8 + $0x30] sm:$0xff]
          %v428 = vld [vmem:[#allocation8 + $0x38] sm:$0xff]
          %v429 = vld [vmem:[#allocation8 + $0x40] sm:$0xff]
          %v430 = vld [vmem:[#allocation8 + $0x48] sm:$0xff]
          %v431 = vld [vmem:[#allocation8 + $0x50] sm:$0xff]
          %v432 = vld [vmem:[#allocation8 + $0x58] sm:$0xff]
          %v433 = vld [vmem:[#allocation8 + $0x60] sm:$0xff]
          %v434 = vld [vmem:[#allocation8 + $0x68] sm:$0xff]
          %v435 = vld [vmem:[#allocation8 + $0x70] sm:$0xff]
          %v436 = vld [vmem:[#allocation8 + $0x78] sm:$0xff]
          %v437 = vld [vmem:[#allocation9] sm:$0x1]
          %v439 = vlaneseq
          %v440 = vshrl.u32 %v439, 7
          %v441 = vsub.s32 0, %v440
          %v442 = vrot.slane %v437, %v441
          %444 = vmatprep.subr.mxu0 0.0
          %445 = vmatpush1.msra.mxu0 %v421
          %446 = vmatprep.subr.mxu0 0.0
          %447 = vmatpush1.msra.mxu0 %v422
          %448 = vmatprep.subr.mxu0 0.0
          %449 = vmatpush1.msra.mxu0 %v423
          %450 = vmatprep.subr.mxu0 0.0
          %451 = vmatpush1.msra.mxu0 %v424
          %452 = vmatprep.subr.mxu0 0.0
          %453 = vmatpush1.msra.mxu0 %v425
          %454 = vmatprep.subr.mxu0 0.0
          %455 = vmatpush1.msra.mxu0 %v426
          %456 = vmatprep.subr.mxu0 0.0
          %457 = vmatpush1.msra.mxu0 %v427
          %458 = vmatprep.subr.mxu0 0.0
          %459 = vmatpush1.msra.mxu0 %v428
          %460 = vmatprep.subr.mxu0 0.0
          %461 = vmatpush1.msra.mxu0 %v429
          %462 = vmatprep.subr.mxu0 0.0
          %463 = vmatpush1.msra.mxu0 %v430
          %464 = vmatprep.subr.mxu0 0.0
          %465 = vmatpush1.msra.mxu0 %v431
          %466 = vmatprep.subr.mxu0 0.0
          %467 = vmatpush1.msra.mxu0 %v432
          %468 = vmatprep.subr.mxu0 0.0
          %469 = vmatpush1.msra.mxu0 %v433
          %470 = vmatprep.subr.mxu0 0.0
          %471 = vmatpush1.msra.mxu0 %v434
          %472 = vmatprep.subr.mxu0 0.0
          %473 = vmatpush1.msra.mxu0 %v435
          %474 = vmatprep.subr.mxu0 0.0
          %475 = vmatpush1.msra.mxu0 %v436
          %476 = vmatprep.subr.mxu0 0.0
          %477 = vmatpush1.msra.mxu0 0.0
          %478 = vmatprep.subr.mxu0 0.0
          %479 = vmatpush1.msra.mxu0 0.0
          %480 = vmatprep.subr.mxu0 0.0
          %481 = vmatpush1.msra.mxu0 0.0
          %482 = vmatprep.subr.mxu0 0.0
          %483 = vmatpush1.msra.mxu0 0.0
          %484 = vmatprep.subr.mxu0 0.0
          %485 = vmatpush1.msra.mxu0 0.0
          %486 = vmatprep.subr.mxu0 0.0
          %487 = vmatpush1.msra.mxu0 0.0
          %488 = vmatprep.subr.mxu0 0.0
          %489 = vmatpush1.msra.mxu0 0.0
          %490 = vmatprep.subr.mxu0 0.0
          %491 = vmatpush1.msra.mxu0 0.0
          %492 = vmatprep.subr.mxu0 0.0
          %493 = vmatpush1.msra.mxu0 0.0
          %494 = vmatprep.subr.mxu0 0.0
          %495 = vmatpush1.msra.mxu0 0.0
          %496 = vmatprep.subr.mxu0 0.0
          %497 = vmatpush1.msra.mxu0 0.0
          %498 = vmatprep.subr.mxu0 0.0
          %499 = vmatpush1.msra.mxu0 0.0
          %500 = vmatprep.subr.mxu0 0.0
          %501 = vmatpush1.msra.mxu0 0.0
          %502 = vmatprep.subr.mxu0 0.0
          %503 = vmatpush1.msra.mxu0 0.0
          %504 = vmatprep.subr.mxu0 0.0
          %505 = vmatpush1.msra.mxu0 0.0
          %506 = vmatprep.subr.mxu0 0.0
          %507 = vmatpush1.msra.mxu0 0.0
          %508 = vmatprep.mubr.f32.mxu0 0.0
          %509 = vmatmul.mubr.f32.gmra.mrb[0].mxu0 %v419
          %v510 = vpop.f32.mrb[0].mxu0
          %v511 = vadd.f32 %v442, %v510
          %v512 = vpop.f32.mrb[0].mxu0
          %513 = vmatprep.mubr.f32.mxu0 0.0
          %514 = vmatmul.mubr.f32.gmra.mrb[0].mxu0 %v420
          %v515 = vpop.f32.mrb[0].mxu0
          %v516 = vadd.f32 %v442, %v515
          %v517 = vpop.f32.mrb[0].mxu0
          %518 = vdwg.mxu0
          %v519 = vmax.f32 %v511, 0.0
          %v520 = vmax.f32 %v516, 0.0
          %521 = vst [vmem:[%s314] sm:$0xff] %v519
          %522 = vst [vmem:[%s314 + $0x8] sm:$0xff] %v520
        $region60: #{tpu_custom_call.1} parent=35 // pred_fallthru
          _
        %s523 = sand.u32 %s154, 1
        %s524 = scalar_lea.sflag [#allocation5], %s523
        %s525 = sand.u32 %s154, 1
        %s526 = smul.addr %s525, 16
        %s527 = scalar_lea.vmem [#allocation11], %s526
        // Predicated region
        $region61: #{tpu_custom_call.1} parent=35 // pred_check
          %p528 = pneg %p164
        $region62: #{tpu_custom_call.1} parent=35 // pred_check_branch
          %530 = sbr.rel (%p528) target = $region64
        $region63: #{tpu_custom_call.1} parent=35 // pred_region
          %s531 = smul.u32 2, %s31
          %s533 = ssub.s32 256, 256
          %534 = vsyncadd %s524, %s533
          %s535 = smul.addr %s30, 2
          %s536 = sadd.s32 %s531, %s535
          %s537 = smul.addr %s536, 128
          %s538 = scalar_lea.hbm %s4, %s537
          %s539 = sshll.u32 %s527, 4
          %s540 = int_to_ptr.vmem [resolvable:$true] %s539
          %545 = dma.vmem_to_hbm [thread:$0]  %s540, 256, %s538, %s524, 128, 128, 8
        $region64: #{tpu_custom_call.1} parent=35 // pred_fallthru
          _
      $region36: #{tpu_custom_call.1} parent=5 // pred_fallthru
        _
      %p546 = scmp.le.s32.totalorder 2, %s20
      // Predicated region
      $region65: #{tpu_custom_call.1} parent=5 // pred_check
        %p547 = pneg %p546
      $region66: #{tpu_custom_call.1} parent=5 // pred_check_branch
        %549 = sbr.rel (%p547) target = $region68
      $region67: #{tpu_custom_call.1} parent=5 // pred_region
        %s550 = ssub.s32 %s20, 2
        // Predicated region
        $region69: #{tpu_custom_call.1} parent=67 // pred_check
          %p551 = pneg %p170
        $region70: #{tpu_custom_call.1} parent=67 // pred_check_branch
          %553 = sbr.rel (%p551) target = $region72
        $region71: #{tpu_custom_call.1} parent=67 // pred_region
          %s554 = sand.u32 %s155, 1
          %s555 = scalar_lea.sflag [#allocation5], %s554
          %s556 = sand.u32 %s155, 1
          %s557 = smul.addr %s556, 16
          %s558 = scalar_lea.vmem [#allocation11], %s557
          %559 = dma.done %s555, 256
        $region72: #{tpu_custom_call.1} parent=67 // pred_fallthru
          _
      $region68: #{tpu_custom_call.1} parent=5 // pred_fallthru
        _
    $region6: #{tpu_custom_call.1} parent=1 // loop_footer
      %s24 = sadd.s32 1, %s20
    $region7: #{tpu_custom_call.1} parent=1 // loop_footer_branch
      %19 = sbr.rel target = $region3
    $region8: #{tpu_custom_call.1} parent=1 // loop_exit
      _
    %560 = vsyncpa [#allocation4], 1
    %s561 = scalar_lea.sflag [#allocation4], 1
    %562 = vsyncpa %s561, 1
    %563 = vsyncpa [#allocation7], 1
    %s564 = scalar_lea.sflag [#allocation7], 1
    %565 = vsyncpa %s564, 1
    %566 = vsyncpa [#allocation10], 1
    %567 = vsyncpa [#allocation5], 1
    %s568 = scalar_lea.sflag [#allocation5], 1
    %569 = vsyncpa %s568, 1

// kernel: tpu_custom_call.1
$region0: #{tpu_custom_call.1}
  #allocation0 [shape = 'u32[]', space=smem, size = 0x4, offset = 0x4, fixed_abs, tag = 'smem constant byte address 0x4 - core index']
  #allocation1 [shape = 'u32[144,128]{1,0:T(1,128)}', space=vmem, size = 0x12000, scoped, tag = 'internal scratch']
  #allocation2 [shape = 'f32[16,128]{1,0:T(8,128)}', space=vmem, size = 0x2000, scoped, tag = 'scratch operand']
  %s0 = inlined_call_operand.hbm [shape: f32[2,16,16], index: 0, kind: input, shape index: {}]
  %s1 = inlined_call_operand.hbm [shape: f32[2,16,128], index: 1, kind: input, shape index: {}]
  %s2 = inlined_call_operand.hbm [shape: f32[128,128], index: 2, kind: input, shape index: {}]
  %s3 = inlined_call_operand.hbm [shape: f32[1,128], index: 3, kind: input, shape index: {}]
  %s4 = inlined_call_operand.hbm [shape: f32[2,16,128], index: 4, kind: output, shape index: {}]
  %s5 = sld [smem:[#allocation0]]
  $region73: #{tpu_custom_call.1} parent=0
    _
  %s7 = ssub.s32 1, %s5
  %s8 = scalar_select 0, %s7, %s5
  $region1: #{tpu_custom_call.1} parent=0
    #allocation3 [shape = 'u8[16384]{0}', space=vmem, size = 0x4000, scoped, tag = 'input window, operand 0']
    #allocation4 [shape = 's32[2]{0}', space=sflag, size = 0x8, scoped, tag = 'scoped memory for tpu_custom_call.1']
    #allocation5 [shape = 's32[2]{0}', space=sflag, size = 0x8, scoped, tag = 'scoped memory for tpu_custom_call.1']
    #allocation6 [shape = 'u8[16384]{0}', space=vmem, size = 0x4000, scoped, tag = 'input window, operand 1']
    #allocation7 [shape = 's32[2]{0}', space=sflag, size = 0x8, scoped, tag = 'scoped memory for tpu_custom_call.1']
    #allocation8 [shape = 'u8[65536]{0}', space=vmem, size = 0x10000, scoped, tag = 'input window, operand 2, single buffered']
    #allocation9 [shape = 'u8[512]{0}', space=vmem, size = 0x400, scoped, tag = 'input window, operand 3, single buffered']
    #allocation10 [shape = 's32[1]{0}', space=sflag, size = 0x4, scoped, tag = 'scoped memory for tpu_custom_call.1']
    #allocation11 [shape = 'u8[16384]{0}', space=vmem, size = 0x4000, scoped, tag = 'output window, operand 0']
    %9 = vsyncpa [#allocation4], 0
    %s10 = scalar_lea.sflag [#allocation4], 1
    %11 = vsyncpa %s10, 0
    %12 = vsyncpa [#allocation7], 0
    %s13 = scalar_lea.sflag [#allocation7], 1
    %14 = vsyncpa %s13, 0
    %15 = vsyncpa [#allocation10], 0
    %16 = vsyncpa [#allocation5], 0
    %s17 = scalar_lea.sflag [#allocation5], 1
    %18 = vsyncpa %s17, 0
    loop: start=0, step=1, limit=4
    $region2: #{tpu_custom_call.1} parent=1 // loop_pre_header
      _
    $region3: #{tpu_custom_call.1} parent=1 // loop_header
      %s20 = sphi 0, %s24
      %p21 = scmp.ge.s32.totalorder %s20, 4
      %s27 = sphi 0, %s46
      %s28 = sphi 0, %s42
      %s29 = sphi 0, %s38
      %s30 = sphi 0, %s27
      %s31 = sphi 0, %s28
      %s32 = sphi 0, %s29
      %s33 = sphi 0, %s30
      %s34 = sphi 0, %s31
      %s35 = sphi 0, %s32
      %s53 = sphi 0, %s55
      %s56 = sphi 0, %s53
      %s57 = sphi 0, %s56
      %s73 = sphi 0, %s57
      %s81 = sphi 0, %s83
      %s84 = sphi 0, %s81
      %s85 = sphi 0, %s84
      %s101 = sphi 0, %s85
      %s105 = sphi 0, %s105
      %s107 = sphi 0, %s105
      %s108 = sphi 0, %s107
      %s122 = sphi 0, %s108
      %s126 = sphi 0, %s126
      %s128 = sphi 0, %s126
      %s129 = sphi 0, %s128
      %s143 = sphi 0, %s129
      %s151 = sphi 0, %s153
      %s154 = sphi 0, %s151
      %s155 = sphi 0, %s154
      %s171 = sphi 0, %s155
    $region4: #{tpu_custom_call.1} parent=1 // loop_header_branch
      %23 = sbr.rel (%p21) target = $region8
    $region5: #{tpu_custom_call.1} parent=1 // loop_body
      %s25 = ssub.s32 %s20, 1
      %s26 = ssub.s32 %s20, 2
      %s36 = sadd.s32 1, %s29
      %p37 = scmp.ge.s32.totalorder %s36, 1
      %s38 = scalar_select %p37, 0, %s36
      %s39 = sadd.s32 1, %s28
      %s40 = scalar_select %p37, %s39, %s28
      %p41 = scmp.ge.s32.totalorder %s40, 1
      %s42 = scalar_select %p41, 0, %s40
      %s43 = sadd.s32 1, %s27
      %s44 = scalar_select %p41, %s43, %s27
      %p45 = scmp.ge.s32.totalorder %s44, 2
      %s46 = scalar_select %p45, 0, %s44
      %s47 = ssub.s32 %s27, %s46
      %s48 = ssub.s32 %s28, %s42
      %s49 = sor.u32 %s47, %s48
      %s50 = ssub.s32 %s29, %s38
      %s51 = sor.u32 %s49, %s50
      %p52 = scmp.eq.s32.totalorder %s51, 0
      %s54 = sadd.s32 %s53, 1
      %s55 = scalar_select %p52, %s53, %s54
      %p58 = pneg %p52
      %p59 = scmp.eq.s32.totalorder %s20, 1
      %p60 = por %p58, %p59
      %p61 = scmp.ne.s32.totalorder %s53, %s56
      %p62 = scmp.eq.s32.totalorder %s20, 0
      %p63 = por %p61, %p62
      %p64 = scmp.ne.s32.totalorder %s53, %s56
      %p65 = scmp.eq.s32.totalorder %s25, 1
      %p66 = por %p64, %p65
      %p67 = scmp.ne.s32.totalorder %s56, %s57
      %p68 = scmp.eq.s32.totalorder %s25, 0
      %p69 = por %p67, %p68
      %p70 = scmp.ne.s32.totalorder %s56, %s57
      %p71 = scmp.eq.s32.totalorder %s26, 1
      %p72 = por %p70, %p71
      %p74 = scmp.ne.s32.totalorder %s57, %s73
      %p75 = scmp.eq.s32.totalorder %s26, 0
      %p76 = por %p74, %p75
      %s77 = ssub.s32 %s27, %s46
      %s78 = ssub.s32 %s29, %s38
      %s79 = sor.u32 %s77, %s78
      %p80 = scmp.eq.s32.totalorder %s79, 0
      %s82 = sadd.s32 %s81, 1
      %s83 = scalar_select %p80, %s81, %s82
      %p86 = pneg %p80
      %p87 = scmp.eq.s32.totalorder %s20, 1
      %p88 = por %p86, %p87
      %p89 = scmp.ne.s32.totalorder %s81, %s84
      %p90 = scmp.eq.s32.totalorder %s20, 0
      %p91 = por %p89, %p90
      %p92 = scmp.ne.s32.totalorder %s81, %s84
      %p93 = scmp.eq.s32.totalorder %s25, 1
      %p94 = por %p92, %p93
      %p95 = scmp.ne.s32.totalorder %s84, %s85
      %p96 = scmp.eq.s32.totalorder %s25, 0
      %p97 = por %p95, %p96
      %p98 = scmp.ne.s32.totalorder %s84, %s85
      %p99 = scmp.eq.s32.totalorder %s26, 1
      %p100 = por %p98, %p99
      %p102 = scmp.ne.s32.totalorder %s85, %s101
      %p103 = scmp.eq.s32.totalorder %s26, 0
      %p104 = por %p102, %p103
      %s106 = sadd.s32 %s105, 1
      %p109 = scmp.eq.s32.totalorder %s20, 1
      %p110 = scmp.ne.s32.totalorder %s105, %s107
      %p111 = scmp.eq.s32.totalorder %s20, 0
      %p112 = por %p110, %p111
      %p113 = scmp.ne.s32.totalorder %s105, %s107
      %p114 = scmp.eq.s32.totalorder %s25, 1
      %p115 = por %p113, %p114
      %p116 = scmp.ne.s32.totalorder %s107, %s108
      %p117 = scmp.eq.s32.totalorder %s25, 0
      %p118 = por %p116, %p117
      %p119 = scmp.ne.s32.totalorder %s107, %s108
      %p120 = scmp.eq.s32.totalorder %s26, 1
      %p121 = por %p119, %p120
      %p123 = scmp.ne.s32.totalorder %s108, %s122
      %p124 = scmp.eq.s32.totalorder %s26, 0
      %p125 = por %p123, %p124
      %s127 = sadd.s32 %s126, 1
      %p130 = scmp.eq.s32.totalorder %s20, 1
      %p131 = scmp.ne.s32.totalorder %s126, %s128
      %p132 = scmp.eq.s32.totalorder %s20, 0
      %p133 = por %p131, %p132
      %p134 = scmp.ne.s32.totalorder %s126, %s128
      %p135 = scmp.eq.s32.totalorder %s25, 1
      %p136 = por %p134, %p135
      %p137 = scmp.ne.s32.totalorder %s128, %s129
      %p138 = scmp.eq.s32.totalorder %s25, 0
      %p139 = por %p137, %p138
      %p140 = scmp.ne.s32.totalorder %s128, %s129
      %p141 = scmp.eq.s32.totalorder %s26, 1
      %p142 = por %p140, %p141
      %p144 = scmp.ne.s32.totalorder %s129, %s143
      %p145 = scmp.eq.s32.totalorder %s26, 0
      %p146 = por %p144, %p145
      %s147 = ssub.s32 %s27, %s46
      %s148 = ssub.s32 %s28, %s42
      %s149 = sor.u32 %s147, %s148
      %p150 = scmp.eq.s32.totalorder %s149, 0
      %s152 = sadd.s32 %s151, 1
      %s153 = scalar_select %p150, %s151, %s152
      %p156 = pneg %p150
      %p157 = scmp.eq.s32.totalorder %s20, 1
      %p158 = por %p156, %p157
      %p159 = scmp.ne.s32.totalorder %s151, %s154
      %p160 = scmp.eq.s32.totalorder %s20, 0
      %p161 = por %p159, %p160
      %p162 = scmp.ne.s32.totalorder %s151, %s154
      %p163 = scmp.eq.s32.totalorder %s25, 1
      %p164 = por %p162, %p163
      %p165 = scmp.ne.s32.totalorder %s154, %s155
      %p166 = scmp.eq.s32.totalorder %s25, 0
      %p167 = por %p165, %p166
      %p168 = scmp.ne.s32.totalorder %s154, %s155
      %p169 = scmp.eq.s32.totalorder %s26, 1
      %p170 = por %p168, %p169
      %p172 = scmp.ne.s32.totalorder %s155, %s171
      %p173 = scmp.eq.s32.totalorder %s26, 0
      %p174 = por %p172, %p173
      %p175 = scmp.le.s32.totalorder 1, %s20
      %p176 = scmp.lt.s32.totalorder %s20, 3
      %p177 = pnand %p175, %p176
      %p178 = pneg %p177
      // Predicated region
      $region9: #{tpu_custom_call.1} parent=5 // pred_check
        _
      $region10: #{tpu_custom_call.1} parent=5 // pred_check_branch
        %180 = sbr.rel (%p177) target = $region12
      $region11: #{tpu_custom_call.1} parent=5 // pred_region
        %s181 = ssub.s32 %s20, 1
        // Predicated region
        $region13: #{tpu_custom_call.1} parent=11 // pred_check
          %p182 = pneg %p118
        $region14: #{tpu_custom_call.1} parent=11 // pred_check_branch
          %184 = sbr.rel (%p182) target = $region16
        $region15: #{tpu_custom_call.1} parent=11 // pred_region
          %s186 = ssub.s32 2048, 2048
          %187 = vsyncadd [#allocation7], %s186
          %s188 = sshll.u32 [#allocation8], 4
          %s189 = int_to_ptr.vmem [resolvable:$true] %s188
          %194 = dma.hbm_to_vmem [thread:$0]  %s2, 2048, %s189, [#allocation7], 128, 128, 8
        $region16: #{tpu_custom_call.1} parent=11 // pred_fallthru
          _
        // Predicated region
        $region17: #{tpu_custom_call.1} parent=11 // pred_check
          %p195 = pneg %p139
        $region18: #{tpu_custom_call.1} parent=11 // pred_check_branch
          %197 = sbr.rel (%p195) target = $region20
        $region19: #{tpu_custom_call.1} parent=11 // pred_region
          %s199 = ssub.s32 16, 16
          %200 = vsyncadd [#allocation10], %s199
          %s202 = sshll.u32 [#allocation9], 4
          %s203 = int_to_ptr.vmem [resolvable:$true] %s202
          %205 = dma.hbm_to_vmem [thread:$0]  %s3, 16, %s203, [#allocation10]
        $region20: #{tpu_custom_call.1} parent=11 // pred_fallthru
          _
      $region12: #{tpu_custom_call.1} parent=5 // pred_fallthru
        _
      %p206 = scmp.lt.s32.totalorder %s20, 2
      // Predicated region
      $region21: #{tpu_custom_call.1} parent=5 // pred_check
        %p207 = pneg %p206
      $region22: #{tpu_custom_call.1} parent=5 // pred_check_branch
        %209 = sbr.rel (%p207) target = $region24
      $region23: #{tpu_custom_call.1} parent=5 // pred_region
        // Predicated region
        $region25: #{tpu_custom_call.1} parent=23 // pred_check
          %p210 = pneg %p63
        $region26: #{tpu_custom_call.1} parent=23 // pred_check_branch
          %212 = sbr.rel (%p210) target = $region28
        $region27: #{tpu_custom_call.1} parent=23 // pred_region
          %s213 = sand.u32 %s53, 1
          %s214 = scalar_lea.sflag [#allocation4], %s213
          %s215 = sand.u32 %s53, 1
          %s216 = smul.addr %s215, 16
          %s217 = scalar_lea.vmem [#allocation3], %s216
          %s218 = smul.u32 2, %s28
          %s220 = ssub.s32 256, 256
          %221 = vsyncadd %s214, %s220
          %s222 = sadd.s32 %s29, %s218
          %s223 = smul.addr %s27, 2
          %s224 = sadd.s32 %s222, %s223
          %s225 = smul.addr %s224, 128
          %s226 = scalar_lea.hbm %s0, %s225
          %s227 = sshll.u32 %s217, 4
          %s228 = int_to_ptr.vmem [resolvable:$true] %s227
          %233 = dma.hbm_to_vmem [thread:$0]  %s226, 256, %s228, %s214, 128, 128, 8
        $region28: #{tpu_custom_call.1} parent=23 // pred_fallthru
          _
        // Predicated region
        $region29: #{tpu_custom_call.1} parent=23 // pred_check
          %p234 = pneg %p91
        $region30: #{tpu_custom_call.1} parent=23 // pred_check_branch
          %236 = sbr.rel (%p234) target = $region32
        $region31: #{tpu_custom_call.1} parent=23 // pred_region
          %s237 = sand.u32 %s20, 1
          %s238 = scalar_lea.sflag [#allocation7], %s237
          %s239 = sand.u32 %s81, 1
          %s240 = smul.addr %s239, 16
          %s241 = scalar_lea.vmem [#allocation6], %s240
          %s242 = smul.u32 2, %s29
          %s244 = ssub.s32 256, 256
          %245 = vsyncadd %s238, %s244
          %s246 = smul.addr %s27, 2
          %s247 = sadd.s32 %s242, %s246
          %s248 = smul.addr %s247, 128
          %s249 = scalar_lea.hbm %s1, %s248
          %s250 = sshll.u32 %s241, 4
          %s251 = int_to_ptr.vmem [resolvable:$true] %s250
          %256 = dma.hbm_to_vmem [thread:$0]  %s249, 256, %s251, %s238, 128, 128, 8
        $region32: #{tpu_custom_call.1} parent=23 // pred_fallthru
          _
      $region24: #{tpu_custom_call.1} parent=5 // pred_fallthru
        _
      %p257 = scmp.le.s32.totalorder 1, %s20
      %p258 = scmp.lt.s32.totalorder %s20, 3
      %p259 = pnand %p257, %p258
      %p260 = pneg %p259
      // Predicated region
      $region33: #{tpu_custom_call.1} parent=5 // pred_check
        _
      $region34: #{tpu_custom_call.1} parent=5 // pred_check_branch
        %262 = sbr.rel (%p259) target = $region36
      $region35: #{tpu_custom_call.1} parent=5 // pred_region
        %s263 = ssub.s32 %s20, 1
        %s264 = sand.u32 %s56, 1
        %s265 = scalar_lea.sflag [#allocation4], %s264
        %s266 = sand.u32 %s56, 1
        %s267 = smul.addr %s266, 16
        %s268 = scalar_lea.vmem [#allocation3], %s267
        // Predicated region
        $region37: #{tpu_custom_call.1} parent=35 // pred_check
          %p269 = pneg %p69
        $region38: #{tpu_custom_call.1} parent=35 // pred_check_branch
          %271 = sbr.rel (%p269) target = $region40
        $region39: #{tpu_custom_call.1} parent=35 // pred_region
          %272 = dma.done %s265, 256
        $region40: #{tpu_custom_call.1} parent=35 // pred_fallthru
          _
        %s273 = sand.u32 %s25, 1
        %s274 = scalar_lea.sflag [#allocation7], %s273
        %s275 = sand.u32 %s84, 1
        %s276 = smul.addr %s275, 16
        %s277 = scalar_lea.vmem [#allocation6], %s276
        // Predicated region
        $region41: #{tpu_custom_call.1} parent=35 // pred_check
          %p278 = pneg %p97
        $region42: #{tpu_custom_call.1} parent=35 // pred_check_branch
          %280 = sbr.rel (%p278) target = $region44
        $region43: #{tpu_custom_call.1} parent=35 // pred_region
          %281 = dma.done %s274, 256
        $region44: #{tpu_custom_call.1} parent=35 // pred_fallthru
          _
        // Predicated region
        $region45: #{tpu_custom_call.1} parent=35 // pred_check
          %p282 = pneg %p118
        $region46: #{tpu_custom_call.1} parent=35 // pred_check_branch
          %284 = sbr.rel (%p282) target = $region48
        $region47: #{tpu_custom_call.1} parent=35 // pred_region
          %285 = dma.done [#allocation7], 2048
        $region48: #{tpu_custom_call.1} parent=35 // pred_fallthru
          _
        // Predicated region
        $region49: #{tpu_custom_call.1} parent=35 // pred_check
          %p286 = pneg %p139
        $region50: #{tpu_custom_call.1} parent=35 // pred_check_branch
          %288 = sbr.rel (%p286) target = $region52
        $region51: #{tpu_custom_call.1} parent=35 // pred_region
          %289 = dma.done [#allocation10], 16
        $region52: #{tpu_custom_call.1} parent=35 // pred_fallthru
          _
        %s290 = sand.u32 %s56, 1
        %s291 = scalar_lea.sflag [#allocation4], %s290
        %s292 = sand.u32 %s56, 1
        %s293 = smul.addr %s292, 16
        %s294 = scalar_lea.vmem [#allocation3], %s293
        %p295 = pneg %p69
        %p296 = pneg %p66
        %s297 = sand.u32 %s25, 1
        %s298 = scalar_lea.sflag [#allocation7], %s297
        %s299 = sand.u32 %s84, 1
        %s300 = smul.addr %s299, 16
        %s301 = scalar_lea.vmem [#allocation6], %s300
        %p302 = pneg %p97
        %p303 = pneg %p94
        %p304 = pneg %p118
        %p305 = pneg %p115
        %p306 = pneg %p139
        %p307 = pneg %p136
        %p308 = pneg %p167
        %p309 = pneg %p164
        %s310 = sand.u32 %s154, 1
        %s311 = scalar_lea.sflag [#allocation5], %s310
        %s312 = sand.u32 %s154, 1
        %s313 = smul.addr %s312, 16
        %s314 = scalar_lea.vmem [#allocation11], %s313
        %s315 = smul.u32 2, %s31
        %s316 = smul.u32 2, %s32
        %s317 = smul.u32 2, %s31
        %p318 = scmp.eq.s32.totalorder %s32, 0
        // Predicated region
        $region53: #{tpu_custom_call.1} parent=35 // pred_check
          %p319 = pneg %p318
        $region54: #{tpu_custom_call.1} parent=35 // pred_check_branch
          %321 = sbr.rel (%p319) target = $region56
        $region55: #{tpu_custom_call.1} parent=35 // pred_region
          %322 = vst [vmem:[#allocation2] sm:$0xff] 0.0
          %323 = vst [vmem:[#allocation2 + $0x8] sm:$0xff] 0.0
        $region56: #{tpu_custom_call.1} parent=35 // pred_fallthru
          _
        %v324 = vld [vmem:[#allocation2] sm:$0xff]
        %v325 = vld [vmem:[#allocation2 + $0x8] sm:$0xff]
        %v326 = vld [vmem:[%s268] sm:$0xff]
        %v327 = vld [vmem:[%s268 + $0x8] sm:$0xff]
        %v328 = vld [vmem:[%s277] sm:$0xff]
        %v329 = vld [vmem:[%s277 + $0x8] sm:$0xff]
        %vm330 = vcmask 130048
        %v332 = vsel %vm330, %v326, 0
        %v335 = vsel %vm330, %v327, 0
        %337 = vmatprep.subr.mxu0 0.0
        %338 = vmatpush1.msra.mxu0 %v328
        %339 = vmatprep.subr.mxu0 0.0
        %340 = vmatpush1.msra.mxu0 %v329
        %341 = vmatprep.subr.mxu0 0.0
        %342 = vmatpush1.msra.mxu0 0.0
        %343 = vmatprep.subr.mxu0 0.0
        %344 = vmatpush1.msra.mxu0 0.0
        %345 = vmatprep.subr.mxu0 0.0
        %346 = vmatpush1.msra.mxu0 0.0
        %347 = vmatprep.subr.mxu0 0.0
        %348 = vmatpush1.msra.mxu0 0.0
        %349 = vmatprep.subr.mxu0 0.0
        %350 = vmatpush1.msra.mxu0 0.0
        %351 = vmatprep.subr.mxu0 0.0
        %352 = vmatpush1.msra.mxu0 0.0
        %353 = vmatprep.subr.mxu0 0.0
        %354 = vmatpush1.msra.mxu0 0.0
        %355 = vmatprep.subr.mxu0 0.0
        %356 = vmatpush1.msra.mxu0 0.0
        %357 = vmatprep.subr.mxu0 0.0
        %358 = vmatpush1.msra.mxu0 0.0
        %359 = vmatprep.subr.mxu0 0.0
        %360 = vmatpush1.msra.mxu0 0.0
        %361 = vmatprep.subr.mxu0 0.0
        %362 = vmatpush1.msra.mxu0 0.0
        %363 = vmatprep.subr.mxu0 0.0
        %364 = vmatpush1.msra.mxu0 0.0
        %365 = vmatprep.subr.mxu0 0.0
        %366 = vmatpush1.msra.mxu0 0.0
        %367 = vmatprep.subr.mxu0 0.0
        %368 = vmatpush1.msra.mxu0 0.0
        %369 = vmatprep.subr.mxu0 0.0
        %370 = vmatpush1.msra.mxu0 0.0
        %371 = vmatprep.subr.mxu0 0.0
        %372 = vmatpush1.msra.mxu0 0.0
        %373 = vmatprep.subr.mxu0 0.0
        %374 = vmatpush1.msra.mxu0 0.0
        %375 = vmatprep.subr.mxu0 0.0
        %376 = vmatpush1.msra.mxu0 0.0
        %377 = vmatprep.subr.mxu0 0.0
        %378 = vmatpush1.msra.mxu0 0.0
        %379 = vmatprep.subr.mxu0 0.0
        %380 = vmatpush1.msra.mxu0 0.0
        %381 = vmatprep.subr.mxu0 0.0
        %382 = vmatpush1.msra.mxu0 0.0
        %383 = vmatprep.subr.mxu0 0.0
        %384 = vmatpush1.msra.mxu0 0.0
        %385 = vmatprep.subr.mxu0 0.0
        %386 = vmatpush1.msra.mxu0 0.0
        %387 = vmatprep.subr.mxu0 0.0
        %388 = vmatpush1.msra.mxu0 0.0
        %389 = vmatprep.subr.mxu0 0.0
        %390 = vmatpush1.msra.mxu0 0.0
        %391 = vmatprep.subr.mxu0 0.0
        %392 = vmatpush1.msra.mxu0 0.0
        %393 = vmatprep.subr.mxu0 0.0
        %394 = vmatpush1.msra.mxu0 0.0
        %395 = vmatprep.subr.mxu0 0.0
        %396 = vmatpush1.msra.mxu0 0.0
        %397 = vmatprep.subr.mxu0 0.0
        %398 = vmatpush1.msra.mxu0 0.0
        %399 = vmatprep.subr.mxu0 0.0
        %400 = vmatpush1.msra.mxu0 0.0
        %401 = vmatprep.mubr.f32.mxu0 0.0
        %402 = vmatmul.mubr.f32.gmra.mrb[0].mxu0 %v332
        %v403 = vpop.f32.mrb[0].mxu0
        %v404 = vadd.f32 0.0, %v403
        %v405 = vpop.f32.mrb[0].mxu0
        %406 = vmatprep.mubr.f32.mxu0 0.0
        %407 = vmatmul.mubr.f32.gmra.mrb[0].mxu0 %v335
        %v408 = vpop.f32.mrb[0].mxu0
        %v409 = vadd.f32 0.0, %v408
        %v410 = vpop.f32.mrb[0].mxu0
        %411 = vdwg.mxu0
        %v412 = vadd.f32 %v324, %v404
        %v413 = vadd.f32 %v325, %v409
        %414 = vst [vmem:[#allocation2] sm:$0xff] %v412
        %415 = vst [vmem:[#allocation2 + $0x8] sm:$0xff] %v413
        // Predicated region
        $region57: #{tpu_custom_call.1} parent=35 // pred_check
          %p416 = pneg %p318
        $region58: #{tpu_custom_call.1} parent=35 // pred_check_branch
          %418 = sbr.rel (%p416) target = $region60
        $region59: #{tpu_custom_call.1} parent=35 // pred_region
          %v419 = vld [vmem:[#allocation2] sm:$0xff]
          %v420 = vld [vmem:[#allocation2 + $0x8] sm:$0xff]
          %v421 = vld [vmem:[#allocation8] sm:$0xff]
          %v422 = vld [vmem:[#allocation8 + $0x8] sm:$0xff]
          %v423 = vld [vmem:[#allocation8 + $0x10] sm:$0xff]
          %v424 = vld [vmem:[#allocation8 + $0x18] sm:$0xff]
          %v425 = vld [vmem:[#allocation8 + $0x20] sm:$0xff]
          %v426 = vld [vmem:[#allocation8 + $0x28] sm:$0xff]
          %v427 = vld [vmem:[#allocation8 + $0x30] sm:$0xff]
          %v428 = vld [vmem:[#allocation8 + $0x38] sm:$0xff]
          %v429 = vld [vmem:[#allocation8 + $0x40] sm:$0xff]
          %v430 = vld [vmem:[#allocation8 + $0x48] sm:$0xff]
          %v431 = vld [vmem:[#allocation8 + $0x50] sm:$0xff]
          %v432 = vld [vmem:[#allocation8 + $0x58] sm:$0xff]
          %v433 = vld [vmem:[#allocation8 + $0x60] sm:$0xff]
          %v434 = vld [vmem:[#allocation8 + $0x68] sm:$0xff]
          %v435 = vld [vmem:[#allocation8 + $0x70] sm:$0xff]
          %v436 = vld [vmem:[#allocation8 + $0x78] sm:$0xff]
          %v437 = vld [vmem:[#allocation9] sm:$0x1]
          %v439 = vlaneseq
          %v440 = vshrl.u32 %v439, 7
          %v441 = vsub.s32 0, %v440
          %v442 = vrot.slane %v437, %v441
          %444 = vmatprep.subr.mxu0 0.0
          %445 = vmatpush1.msra.mxu0 %v421
          %446 = vmatprep.subr.mxu0 0.0
          %447 = vmatpush1.msra.mxu0 %v422
          %448 = vmatprep.subr.mxu0 0.0
          %449 = vmatpush1.msra.mxu0 %v423
          %450 = vmatprep.subr.mxu0 0.0
          %451 = vmatpush1.msra.mxu0 %v424
          %452 = vmatprep.subr.mxu0 0.0
          %453 = vmatpush1.msra.mxu0 %v425
          %454 = vmatprep.subr.mxu0 0.0
          %455 = vmatpush1.msra.mxu0 %v426
          %456 = vmatprep.subr.mxu0 0.0
          %457 = vmatpush1.msra.mxu0 %v427
          %458 = vmatprep.subr.mxu0 0.0
          %459 = vmatpush1.msra.mxu0 %v428
          %460 = vmatprep.subr.mxu0 0.0
          %461 = vmatpush1.msra.mxu0 %v429
          %462 = vmatprep.subr.mxu0 0.0
          %463 = vmatpush1.msra.mxu0 %v430
          %464 = vmatprep.subr.mxu0 0.0
          %465 = vmatpush1.msra.mxu0 %v431
          %466 = vmatprep.subr.mxu0 0.0
          %467 = vmatpush1.msra.mxu0 %v432
          %468 = vmatprep.subr.mxu0 0.0
          %469 = vmatpush1.msra.mxu0 %v433
          %470 = vmatprep.subr.mxu0 0.0
          %471 = vmatpush1.msra.mxu0 %v434
          %472 = vmatprep.subr.mxu0 0.0
          %473 = vmatpush1.msra.mxu0 %v435
          %474 = vmatprep.subr.mxu0 0.0
          %475 = vmatpush1.msra.mxu0 %v436
          %476 = vmatprep.subr.mxu0 0.0
          %477 = vmatpush1.msra.mxu0 0.0
          %478 = vmatprep.subr.mxu0 0.0
          %479 = vmatpush1.msra.mxu0 0.0
          %480 = vmatprep.subr.mxu0 0.0
          %481 = vmatpush1.msra.mxu0 0.0
          %482 = vmatprep.subr.mxu0 0.0
          %483 = vmatpush1.msra.mxu0 0.0
          %484 = vmatprep.subr.mxu0 0.0
          %485 = vmatpush1.msra.mxu0 0.0
          %486 = vmatprep.subr.mxu0 0.0
          %487 = vmatpush1.msra.mxu0 0.0
          %488 = vmatprep.subr.mxu0 0.0
          %489 = vmatpush1.msra.mxu0 0.0
          %490 = vmatprep.subr.mxu0 0.0
          %491 = vmatpush1.msra.mxu0 0.0
          %492 = vmatprep.subr.mxu0 0.0
          %493 = vmatpush1.msra.mxu0 0.0
          %494 = vmatprep.subr.mxu0 0.0
          %495 = vmatpush1.msra.mxu0 0.0
          %496 = vmatprep.subr.mxu0 0.0
          %497 = vmatpush1.msra.mxu0 0.0
          %498 = vmatprep.subr.mxu0 0.0
          %499 = vmatpush1.msra.mxu0 0.0
          %500 = vmatprep.subr.mxu0 0.0
          %501 = vmatpush1.msra.mxu0 0.0
          %502 = vmatprep.subr.mxu0 0.0
          %503 = vmatpush1.msra.mxu0 0.0
          %504 = vmatprep.subr.mxu0 0.0
          %505 = vmatpush1.msra.mxu0 0.0
          %506 = vmatprep.subr.mxu0 0.0
          %507 = vmatpush1.msra.mxu0 0.0
          %508 = vmatprep.mubr.f32.mxu0 0.0
          %509 = vmatmul.mubr.f32.gmra.mrb[0].mxu0 %v419
          %v510 = vpop.f32.mrb[0].mxu0
          %v511 = vadd.f32 %v442, %v510
          %v512 = vpop.f32.mrb[0].mxu0
          %513 = vmatprep.mubr.f32.mxu0 0.0
          %514 = vmatmul.mubr.f32.gmra.mrb[0].mxu0 %v420
          %v515 = vpop.f32.mrb[0].mxu0
          %v516 = vadd.f32 %v442, %v515
          %v517 = vpop.f32.mrb[0].mxu0
          %518 = vdwg.mxu0
          %v519 = vmax.f32 %v511, 0.0
          %v520 = vmax.f32 %v516, 0.0
          %521 = vst [vmem:[%s314] sm:$0xff] %v519
          %522 = vst [vmem:[%s314 + $0x8] sm:$0xff] %v520
        $region60: #{tpu_custom_call.1} parent=35 // pred_fallthru
          _
        %s523 = sand.u32 %s154, 1
        %s524 = scalar_lea.sflag [#allocation5], %s523
        %s525 = sand.u32 %s154, 1
        %s526 = smul.addr %s525, 16
        %s527 = scalar_lea.vmem [#allocation11], %s526
        // Predicated region
        $region61: #{tpu_custom_call.1} parent=35 // pred_check
          %p528 = pneg %p164
        $region62: #{tpu_custom_call.1} parent=35 // pred_check_branch
          %530 = sbr.rel (%p528) target = $region64
        $region63: #{tpu_custom_call.1} parent=35 // pred_region
          %s531 = smul.u32 2, %s31
          %s533 = ssub.s32 256, 256
          %534 = vsyncadd %s524, %s533
          %s535 = smul.addr %s30, 2
          %s536 = sadd.s32 %s531, %s535
          %s537 = smul.addr %s536, 128
          %s538 = scalar_lea.hbm %s4, %s537
          %s539 = sshll.u32 %s527, 4
          %s540 = int_to_ptr.vmem [resolvable:$true] %s539
          %545 = dma.vmem_to_hbm [thread:$0]  %s540, 256, %s538, %s524, 128, 128, 8
        $region64: #{tpu_custom_call.1} parent=35 // pred_fallthru
          _
      $region36: #{tpu_custom_call.1} parent=5 // pred_fallthru
        _
      %p546 = scmp.le.s32.totalorder 2, %s20
      // Predicated region
      $region65: #{tpu_custom_call.1} parent=5 // pred_check
        %p547 = pneg %p546
      $region66: #{tpu_custom_call.1} parent=5 // pred_check_branch
        %549 = sbr.rel (%p547) target = $region68
      $region67: #{tpu_custom_call.1} parent=5 // pred_region
        %s550 = ssub.s32 %s20, 2
        // Predicated region
        $region69: #{tpu_custom_call.1} parent=67 // pred_check
          %p551 = pneg %p170
        $region70: #{tpu_custom_call.1} parent=67 // pred_check_branch
          %553 = sbr.rel (%p551) target = $region72
        $region71: #{tpu_custom_call.1} parent=67 // pred_region
          %s554 = sand.u32 %s155, 1
          %s555 = scalar_lea.sflag [#allocation5], %s554
          %s556 = sand.u32 %s155, 1
          %s557 = smul.addr %s556, 16
          %s558 = scalar_lea.vmem [#allocation11], %s557
          %559 = dma.done %s555, 256
        $region72: #{tpu_custom_call.1} parent=67 // pred_fallthru
          _
      $region68: #{tpu_custom_call.1} parent=5 // pred_fallthru
        _
    $region6: #{tpu_custom_call.1} parent=1 // loop_footer
      %s24 = sadd.s32 1, %s20
    $region7: #{tpu_custom_call.1} parent=1 // loop_footer_branch
      %19 = sbr.rel target = $region3
    $region8: #{tpu_custom_call.1} parent=1 // loop_exit
      _
    %560 = vsyncpa [#allocation4], 1
    %s561 = scalar_lea.sflag [#allocation4], 1
    %562 = vsyncpa %s561, 1
    %563 = vsyncpa [#allocation7], 1
    %s564 = scalar_lea.sflag [#allocation7], 1
    %565 = vsyncpa %s564, 1
    %566 = vsyncpa [#allocation10], 1
    %567 = vsyncpa [#allocation5], 1
    %s568 = scalar_lea.sflag [#allocation5], 1
    %569 = vsyncpa %s568, 1

</llo_original>
